<compile_context>
chip_gen: v6e
topology: v6e:2x2x1
jax: 0.10.0
libtpu: 0.0.40
codegen_flags: <defaults>
</compile_context>

<pallas_src>
import functools

import jax
import jax.numpy as jnp
from jax.experimental import pallas as pl
from jax.experimental.pallas import tpu as pltpu


# ----------------------------------------------------------------------------
# Pallas kernel: per-mode real 4-matmul form on the MXU
#   xr_ref, xi_ref: (mode_block, B, Cin)     bf16
#   wr_ref, wi_ref: (mode_block, Cin, Cout)  bf16
#   o_ref:          (mode_block, B, 2*Cout)  f32   ([out_r | out_i] on the lane axis)
# ----------------------------------------------------------------------------
def _spectral_matmul_kernel(xr_ref, xi_ref, wr_ref, wi_ref, o_ref):
    mode_block = xr_ref.shape[0]

    def per_mode(m, carry):
        xr_m = xr_ref[m]                      # (B, Cin)   bf16
        xi_m = xi_ref[m]
        wr_m = wr_ref[m]                      # (Cin, Cout) bf16
        wi_m = wi_ref[m]
        rr = jnp.dot(xr_m, wr_m, preferred_element_type=jnp.float32)
        ii = jnp.dot(xi_m, wi_m, preferred_element_type=jnp.float32)
        ri = jnp.dot(xr_m, wi_m, preferred_element_type=jnp.float32)
        ir = jnp.dot(xi_m, wr_m, preferred_element_type=jnp.float32)
        # Assemble [out_r | out_i] in VMEM so the store is a single lane-dense write.
        o_ref[m] = jnp.concatenate([rr - ii, ri + ir], axis=-1)
        return carry

    jax.lax.fori_loop(0, mode_block, per_mode, 0, unroll=True)


def spectral_mul(xr, xi, wr_t, wi_t, *, mode_block=32):
    """Complex spectral multiply, mode-blocked.

    xr, xi:     (M, B, Cin)    bf16 (or f32)
    wr_t, wi_t: (M, Cin, Cout) bf16 (or f32)
    returns     (M, B, 2*Cout) f32  = [out_r | out_i] along the last axis
    """
    M, B, Cin = xr.shape
    Cout = wr_t.shape[2]
    mode_block = max(1, min(mode_block, M))
    grid = (pl.cdiv(M, mode_block),)          # ragged tail handled by edge masking

    flops = 8 * B * Cin * Cout * M
    bytes_accessed = (
        (xr.size + xi.size) * xr.dtype.itemsize
        + (wr_t.size + wi_t.size) * wr_t.dtype.itemsize
        + M * B * 2 * Cout * 4
    )

    return pl.pallas_call(
        _spectral_matmul_kernel,
        out_shape=jax.ShapeDtypeStruct((M, B, 2 * Cout), jnp.float32),
        grid_spec=pltpu.PrefetchScalarGridSpec(
            num_scalar_prefetch=0,
            grid=grid,
            in_specs=[
                pl.BlockSpec((mode_block, B, Cin), lambda m: (m, 0, 0)),
                pl.BlockSpec((mode_block, B, Cin), lambda m: (m, 0, 0)),
                pl.BlockSpec((mode_block, Cin, Cout), lambda m: (m, 0, 0)),
                pl.BlockSpec((mode_block, Cin, Cout), lambda m: (m, 0, 0)),
            ],
            out_specs=pl.BlockSpec((mode_block, B, 2 * Cout), lambda m: (m, 0, 0)),
        ),
        compiler_params=pltpu.CompilerParams(
            dimension_semantics=("parallel",),
            vmem_limit_bytes=64 * 1024 * 1024,
        ),
        cost_estimate=pl.CostEstimate(
            flops=flops, transcendentals=0, bytes_accessed=bytes_accessed
        ),
    )(xr, xi, wr_t, wi_t)


# ----------------------------------------------------------------------------
# Full forward pass of SpectralConv1d
# ----------------------------------------------------------------------------
@functools.partial(jax.jit, static_argnames=("modes1",))
def spectral_conv1d(x, wr, wi, modes1):
    """x: (B, C_in, N) float32; wr/wi: (C_in, C_out, modes1) float32."""
    B, Cin, N = x.shape
    Cout = wr.shape[1]
    K = N // 2 + 1

    # TODO(synk): rfft/irfft have no Pallas TPU equivalent; kept in plain JAX (glue).
    x_ft = jnp.fft.rfft(x, axis=-1)                        # (B, Cin, K) complex64
    xk = x_ft[:, :, :modes1]                               # (B, Cin, M) — M << N

    # Mode-major bf16 MXU operands (one small fused slice/transpose/cast pass each;
    # no stacking/negation/duplication of weights).
    xr = jnp.transpose(jnp.real(xk), (2, 0, 1)).astype(jnp.bfloat16)    # (M, B, Cin)
    xi = jnp.transpose(jnp.imag(xk), (2, 0, 1)).astype(jnp.bfloat16)
    wr_t = jnp.transpose(wr, (2, 0, 1)).astype(jnp.bfloat16)            # (M, Cin, Cout)
    wi_t = jnp.transpose(wi, (2, 0, 1)).astype(jnp.bfloat16)

    out = spectral_mul(xr, xi, wr_t, wi_t)                 # (M, B, 2*Cout) f32
    out = jnp.transpose(out, (1, 2, 0))                    # (B, 2*Cout, M) — small (M modes)
    out_c = (out[:, :Cout, :] + 1j * out[:, Cout:, :]).astype(jnp.complex64)
    out_ft = jnp.pad(out_c, ((0, 0), (0, 0), (0, K - modes1)))  # zero high modes
    return jnp.fft.irfft(out_ft, n=N, axis=-1)             # (B, Cout, N) float32


# ----------------------------------------------------------------------------
# Pure-JAX reference (mirrors the PyTorch module exactly, full f32/c64)
# ----------------------------------------------------------------------------
def spectral_conv1d_ref(x, w_complex, modes1):
    B, Cin, N = x.shape
    Cout = w_complex.shape[1]
    K = N // 2 + 1
    x_ft = jnp.fft.rfft(x, axis=-1)
    prod = jnp.einsum("bix,iox->box", x_ft[:, :, :modes1], w_complex)
    out_ft = jnp.zeros((B, Cout, K), dtype=jnp.complex64)
    out_ft = out_ft.at[:, :, :modes1].set(prod)
    return jnp.fft.irfft(out_ft, n=N, axis=-1)


if __name__ == "__main__":
    # Module hyper-parameters (small, consistent with SpectralConv1d.__init__)
    in_channels, out_channels, modes1 = 4, 4, 8
    batch, N = 2, 16

    key = jax.random.PRNGKey(0)
    kx, kwr, kwi = jax.random.split(key, 3)

    # Deterministic parameter init: scale * uniform complex weights
    scale = 1.0 / (in_channels * out_channels)
    wr = (scale * jax.random.uniform(kwr, (in_channels, out_channels, modes1))).astype(jnp.float32)
    wi = (scale * jax.random.uniform(kwi, (in_channels, out_channels, modes1))).astype(jnp.float32)
    w_complex = (wr + 1j * wi).astype(jnp.complex64)

    # Example input, (B, C_in, N) like PyTorch
    x = jax.random.normal(kx, (batch, in_channels, N), dtype=jnp.float32)

    out = jax.block_until_ready(spectral_conv1d(x, wr, wi, modes1))
    ref = jax.block_until_ready(spectral_conv1d_ref(x, w_complex, modes1))

    assert out.shape == (batch, out_channels, N)
    # bf16 MXU operands (f32 accumulation) -> relaxed tolerance vs the f32/c64 reference.
    assert jnp.allclose(out, ref, rtol=2e-2, atol=2e-2), "Pallas output mismatch vs reference"

    print("KERNEL_OK")
</pallas_src>

<mosaic_0001>
module attributes {stable_mosaic.version = 11 : i64} {
  func.func @_spectral_matmul_kernel(%arg0: i32, %arg1: memref<8x2x4xbf16, #tpu.memory_space<vmem>>, %arg2: memref<8x2x4xbf16, #tpu.memory_space<vmem>>, %arg3: memref<8x4x4xbf16, #tpu.memory_space<vmem>>, %arg4: memref<8x4x4xbf16, #tpu.memory_space<vmem>>, %arg5: memref<8x2x8xf32, #tpu.memory_space<vmem>>) attributes {dimension_semantics = [#tpu.dimension_semantics<parallel>], iteration_bounds = array<i64: 1>, scalar_prefetch = 0 : i64, scratch_operands = 0 : i64, tpu.core_type = #tpu.core_type<tc>, window_params = [{transform_indices = @transform_0, window_bounds = array<i64: 8, 2, 4>}, {transform_indices = @transform_1, window_bounds = array<i64: 8, 2, 4>}, {transform_indices = @transform_2, window_bounds = array<i64: 8, 4, 4>}, {transform_indices = @transform_3, window_bounds = array<i64: 8, 4, 4>}, {transform_indices = @transform_4, window_bounds = array<i64: 8, 2, 8>}]} {
    %c0_i32 = arith.constant 0 : i32
    %0 = arith.index_cast %c0_i32 : i32 to index
    %c0 = arith.constant 0 : index
    %c0_0 = arith.constant 0 : index
    %1 = vector.load %arg1[%0, %c0, %c0_0] : memref<8x2x4xbf16, #tpu.memory_space<vmem>>, vector<1x2x4xbf16>
    %2 = vector.shape_cast %1 : vector<1x2x4xbf16> to vector<2x4xbf16>
    %3 = arith.index_cast %c0_i32 : i32 to index
    %c0_1 = arith.constant 0 : index
    %c0_2 = arith.constant 0 : index
    %4 = vector.load %arg2[%3, %c0_1, %c0_2] : memref<8x2x4xbf16, #tpu.memory_space<vmem>>, vector<1x2x4xbf16>
    %5 = vector.shape_cast %4 : vector<1x2x4xbf16> to vector<2x4xbf16>
    %6 = arith.index_cast %c0_i32 : i32 to index
    %c0_3 = arith.constant 0 : index
    %c0_4 = arith.constant 0 : index
    %7 = vector.load %arg3[%6, %c0_3, %c0_4] : memref<8x4x4xbf16, #tpu.memory_space<vmem>>, vector<1x4x4xbf16>
    %8 = vector.shape_cast %7 : vector<1x4x4xbf16> to vector<4x4xbf16>
    %9 = arith.index_cast %c0_i32 : i32 to index
    %c0_5 = arith.constant 0 : index
    %c0_6 = arith.constant 0 : index
    %10 = vector.load %arg4[%9, %c0_5, %c0_6] : memref<8x4x4xbf16, #tpu.memory_space<vmem>>, vector<1x4x4xbf16>
    %11 = vector.shape_cast %10 : vector<1x4x4xbf16> to vector<4x4xbf16>
    %cst = arith.constant dense<0.000000e+00> : vector<2x4xf32>
    %12 = tpu.matmul %2, %8, %cst {dimension_numbers = #tpu.dot_dimension_numbers<[1], [0], [0], [1], [0, 0, 1, 1], [], []>} : vector<2x4xbf16>, vector<4x4xbf16>, vector<2x4xf32> -> vector<2x4xf32>
    %cst_7 = arith.constant dense<0.000000e+00> : vector<2x4xf32>
    %13 = tpu.matmul %5, %11, %cst_7 {dimension_numbers = #tpu.dot_dimension_numbers<[1], [0], [0], [1], [0, 0, 1, 1], [], []>} : vector<2x4xbf16>, vector<4x4xbf16>, vector<2x4xf32> -> vector<2x4xf32>
    %cst_8 = arith.constant dense<0.000000e+00> : vector<2x4xf32>
    %14 = tpu.matmul %2, %11, %cst_8 {dimension_numbers = #tpu.dot_dimension_numbers<[1], [0], [0], [1], [0, 0, 1, 1], [], []>} : vector<2x4xbf16>, vector<4x4xbf16>, vector<2x4xf32> -> vector<2x4xf32>
    %cst_9 = arith.constant dense<0.000000e+00> : vector<2x4xf32>
    %15 = tpu.matmul %5, %8, %cst_9 {dimension_numbers = #tpu.dot_dimension_numbers<[1], [0], [0], [1], [0, 0, 1, 1], [], []>} : vector<2x4xbf16>, vector<4x4xbf16>, vector<2x4xf32> -> vector<2x4xf32>
    %16 = arith.subf %12, %13 : vector<2x4xf32>
    %17 = arith.addf %14, %15 : vector<2x4xf32>
    %18 = tpu.concatenate %16, %17 in 1 : vector<2x4xf32>, vector<2x4xf32> -> vector<2x8xf32>
    %19 = arith.index_cast %c0_i32 : i32 to index
    %c0_10 = arith.constant 0 : index
    %c0_11 = arith.constant 0 : index
    %20 = vector.load %arg5[%19, %c0_10, %c0_11] : memref<8x2x8xf32, #tpu.memory_space<vmem>>, vector<1x2x8xf32>
    %21 = vector.shape_cast %20 : vector<1x2x8xf32> to vector<2x8xf32>
    %22 = vector.shape_cast %18 : vector<2x8xf32> to vector<1x2x8xf32>
    tpu.vector_store %arg5[%19, %c0_10, %c0_11], %22 {strides = array<i32>} : memref<8x2x8xf32, #tpu.memory_space<vmem>>, vector<1x2x8xf32>,
    %c1_i32 = arith.constant 1 : i32
    %23 = arith.index_cast %c1_i32 : i32 to index
    %c0_12 = arith.constant 0 : index
    %c0_13 = arith.constant 0 : index
    %24 = vector.load %arg1[%23, %c0_12, %c0_13] : memref<8x2x4xbf16, #tpu.memory_space<vmem>>, vector<1x2x4xbf16>
    %25 = vector.shape_cast %24 : vector<1x2x4xbf16> to vector<2x4xbf16>
    %26 = arith.index_cast %c1_i32 : i32 to index
    %c0_14 = arith.constant 0 : index
    %c0_15 = arith.constant 0 : index
    %27 = vector.load %arg2[%26, %c0_14, %c0_15] : memref<8x2x4xbf16, #tpu.memory_space<vmem>>, vector<1x2x4xbf16>
    %28 = vector.shape_cast %27 : vector<1x2x4xbf16> to vector<2x4xbf16>
    %29 = arith.index_cast %c1_i32 : i32 to index
    %c0_16 = arith.constant 0 : index
    %c0_17 = arith.constant 0 : index
    %30 = vector.load %arg3[%29, %c0_16, %c0_17] : memref<8x4x4xbf16, #tpu.memory_space<vmem>>, vector<1x4x4xbf16>
    %31 = vector.shape_cast %30 : vector<1x4x4xbf16> to vector<4x4xbf16>
    %32 = arith.index_cast %c1_i32 : i32 to index
    %c0_18 = arith.constant 0 : index
    %c0_19 = arith.constant 0 : index
    %33 = vector.load %arg4[%32, %c0_18, %c0_19] : memref<8x4x4xbf16, #tpu.memory_space<vmem>>, vector<1x4x4xbf16>
    %34 = vector.shape_cast %33 : vector<1x4x4xbf16> to vector<4x4xbf16>
    %cst_20 = arith.constant dense<0.000000e+00> : vector<2x4xf32>
    %35 = tpu.matmul %25, %31, %cst_20 {dimension_numbers = #tpu.dot_dimension_numbers<[1], [0], [0], [1], [0, 0, 1, 1], [], []>} : vector<2x4xbf16>, vector<4x4xbf16>, vector<2x4xf32> -> vector<2x4xf32>
    %cst_21 = arith.constant dense<0.000000e+00> : vector<2x4xf32>
    %36 = tpu.matmul %28, %34, %cst_21 {dimension_numbers = #tpu.dot_dimension_numbers<[1], [0], [0], [1], [0, 0, 1, 1], [], []>} : vector<2x4xbf16>, vector<4x4xbf16>, vector<2x4xf32> -> vector<2x4xf32>
    %cst_22 = arith.constant dense<0.000000e+00> : vector<2x4xf32>
    %37 = tpu.matmul %25, %34, %cst_22 {dimension_numbers = #tpu.dot_dimension_numbers<[1], [0], [0], [1], [0, 0, 1, 1], [], []>} : vector<2x4xbf16>, vector<4x4xbf16>, vector<2x4xf32> -> vector<2x4xf32>
    %cst_23 = arith.constant dense<0.000000e+00> : vector<2x4xf32>
    %38 = tpu.matmul %28, %31, %cst_23 {dimension_numbers = #tpu.dot_dimension_numbers<[1], [0], [0], [1], [0, 0, 1, 1], [], []>} : vector<2x4xbf16>, vector<4x4xbf16>, vector<2x4xf32> -> vector<2x4xf32>
    %39 = arith.subf %35, %36 : vector<2x4xf32>
    %40 = arith.addf %37, %38 : vector<2x4xf32>
    %41 = tpu.concatenate %39, %40 in 1 : vector<2x4xf32>, vector<2x4xf32> -> vector<2x8xf32>
    %42 = arith.index_cast %c1_i32 : i32 to index
    %c0_24 = arith.constant 0 : index
    %c0_25 = arith.constant 0 : index
    %43 = vector.load %arg5[%42, %c0_24, %c0_25] : memref<8x2x8xf32, #tpu.memory_space<vmem>>, vector<1x2x8xf32>
    %44 = vector.shape_cast %43 : vector<1x2x8xf32> to vector<2x8xf32>
    %45 = vector.shape_cast %41 : vector<2x8xf32> to vector<1x2x8xf32>
    tpu.vector_store %arg5[%42, %c0_24, %c0_25], %45 {strides = array<i32>} : memref<8x2x8xf32, #tpu.memory_space<vmem>>, vector<1x2x8xf32>,
    %c2_i32 = arith.constant 2 : i32
    %46 = arith.index_cast %c2_i32 : i32 to index
    %c0_26 = arith.constant 0 : index
    %c0_27 = arith.constant 0 : index
    %47 = vector.load %arg1[%46, %c0_26, %c0_27] : memref<8x2x4xbf16, #tpu.memory_space<vmem>>, vector<1x2x4xbf16>
    %48 = vector.shape_cast %47 : vector<1x2x4xbf16> to vector<2x4xbf16>
    %49 = arith.index_cast %c2_i32 : i32 to index
    %c0_28 = arith.constant 0 : index
    %c0_29 = arith.constant 0 : index
    %50 = vector.load %arg2[%49, %c0_28, %c0_29] : memref<8x2x4xbf16, #tpu.memory_space<vmem>>, vector<1x2x4xbf16>
    %51 = vector.shape_cast %50 : vector<1x2x4xbf16> to vector<2x4xbf16>
    %52 = arith.index_cast %c2_i32 : i32 to index
    %c0_30 = arith.constant 0 : index
    %c0_31 = arith.constant 0 : index
    %53 = vector.load %arg3[%52, %c0_30, %c0_31] : memref<8x4x4xbf16, #tpu.memory_space<vmem>>, vector<1x4x4xbf16>
    %54 = vector.shape_cast %53 : vector<1x4x4xbf16> to vector<4x4xbf16>
    %55 = arith.index_cast %c2_i32 : i32 to index
    %c0_32 = arith.constant 0 : index
    %c0_33 = arith.constant 0 : index
    %56 = vector.load %arg4[%55, %c0_32, %c0_33] : memref<8x4x4xbf16, #tpu.memory_space<vmem>>, vector<1x4x4xbf16>
    %57 = vector.shape_cast %56 : vector<1x4x4xbf16> to vector<4x4xbf16>
    %cst_34 = arith.constant dense<0.000000e+00> : vector<2x4xf32>
    %58 = tpu.matmul %48, %54, %cst_34 {dimension_numbers = #tpu.dot_dimension_numbers<[1], [0], [0], [1], [0, 0, 1, 1], [], []>} : vector<2x4xbf16>, vector<4x4xbf16>, vector<2x4xf32> -> vector<2x4xf32>
    %cst_35 = arith.constant dense<0.000000e+00> : vector<2x4xf32>
    %59 = tpu.matmul %51, %57, %cst_35 {dimension_numbers = #tpu.dot_dimension_numbers<[1], [0], [0], [1], [0, 0, 1, 1], [], []>} : vector<2x4xbf16>, vector<4x4xbf16>, vector<2x4xf32> -> vector<2x4xf32>
    %cst_36 = arith.constant dense<0.000000e+00> : vector<2x4xf32>
    %60 = tpu.matmul %48, %57, %cst_36 {dimension_numbers = #tpu.dot_dimension_numbers<[1], [0], [0], [1], [0, 0, 1, 1], [], []>} : vector<2x4xbf16>, vector<4x4xbf16>, vector<2x4xf32> -> vector<2x4xf32>
    %cst_37 = arith.constant dense<0.000000e+00> : vector<2x4xf32>
    %61 = tpu.matmul %51, %54, %cst_37 {dimension_numbers = #tpu.dot_dimension_numbers<[1], [0], [0], [1], [0, 0, 1, 1], [], []>} : vector<2x4xbf16>, vector<4x4xbf16>, vector<2x4xf32> -> vector<2x4xf32>
    %62 = arith.subf %58, %59 : vector<2x4xf32>
    %63 = arith.addf %60, %61 : vector<2x4xf32>
    %64 = tpu.concatenate %62, %63 in 1 : vector<2x4xf32>, vector<2x4xf32> -> vector<2x8xf32>
    %65 = arith.index_cast %c2_i32 : i32 to index
    %c0_38 = arith.constant 0 : index
    %c0_39 = arith.constant 0 : index
    %66 = vector.load %arg5[%65, %c0_38, %c0_39] : memref<8x2x8xf32, #tpu.memory_space<vmem>>, vector<1x2x8xf32>
    %67 = vector.shape_cast %66 : vector<1x2x8xf32> to vector<2x8xf32>
    %68 = vector.shape_cast %64 : vector<2x8xf32> to vector<1x2x8xf32>
    tpu.vector_store %arg5[%65, %c0_38, %c0_39], %68 {strides = array<i32>} : memref<8x2x8xf32, #tpu.memory_space<vmem>>, vector<1x2x8xf32>,
    %c3_i32 = arith.constant 3 : i32
    %69 = arith.index_cast %c3_i32 : i32 to index
    %c0_40 = arith.constant 0 : index
    %c0_41 = arith.constant 0 : index
    %70 = vector.load %arg1[%69, %c0_40, %c0_41] : memref<8x2x4xbf16, #tpu.memory_space<vmem>>, vector<1x2x4xbf16>
    %71 = vector.shape_cast %70 : vector<1x2x4xbf16> to vector<2x4xbf16>
    %72 = arith.index_cast %c3_i32 : i32 to index
    %c0_42 = arith.constant 0 : index
    %c0_43 = arith.constant 0 : index
    %73 = vector.load %arg2[%72, %c0_42, %c0_43] : memref<8x2x4xbf16, #tpu.memory_space<vmem>>, vector<1x2x4xbf16>
    %74 = vector.shape_cast %73 : vector<1x2x4xbf16> to vector<2x4xbf16>
    %75 = arith.index_cast %c3_i32 : i32 to index
    %c0_44 = arith.constant 0 : index
    %c0_45 = arith.constant 0 : index
    %76 = vector.load %arg3[%75, %c0_44, %c0_45] : memref<8x4x4xbf16, #tpu.memory_space<vmem>>, vector<1x4x4xbf16>
    %77 = vector.shape_cast %76 : vector<1x4x4xbf16> to vector<4x4xbf16>
    %78 = arith.index_cast %c3_i32 : i32 to index
    %c0_46 = arith.constant 0 : index
    %c0_47 = arith.constant 0 : index
    %79 = vector.load %arg4[%78, %c0_46, %c0_47] : memref<8x4x4xbf16, #tpu.memory_space<vmem>>, vector<1x4x4xbf16>
    %80 = vector.shape_cast %79 : vector<1x4x4xbf16> to vector<4x4xbf16>
    %cst_48 = arith.constant dense<0.000000e+00> : vector<2x4xf32>
    %81 = tpu.matmul %71, %77, %cst_48 {dimension_numbers = #tpu.dot_dimension_numbers<[1], [0], [0], [1], [0, 0, 1, 1], [], []>} : vector<2x4xbf16>, vector<4x4xbf16>, vector<2x4xf32> -> vector<2x4xf32>
    %cst_49 = arith.constant dense<0.000000e+00> : vector<2x4xf32>
    %82 = tpu.matmul %74, %80, %cst_49 {dimension_numbers = #tpu.dot_dimension_numbers<[1], [0], [0], [1], [0, 0, 1, 1], [], []>} : vector<2x4xbf16>, vector<4x4xbf16>, vector<2x4xf32> -> vector<2x4xf32>
    %cst_50 = arith.constant dense<0.000000e+00> : vector<2x4xf32>
    %83 = tpu.matmul %71, %80, %cst_50 {dimension_numbers = #tpu.dot_dimension_numbers<[1], [0], [0], [1], [0, 0, 1, 1], [], []>} : vector<2x4xbf16>, vector<4x4xbf16>, vector<2x4xf32> -> vector<2x4xf32>
    %cst_51 = arith.constant dense<0.000000e+00> : vector<2x4xf32>
    %84 = tpu.matmul %74, %77, %cst_51 {dimension_numbers = #tpu.dot_dimension_numbers<[1], [0], [0], [1], [0, 0, 1, 1], [], []>} : vector<2x4xbf16>, vector<4x4xbf16>, vector<2x4xf32> -> vector<2x4xf32>
    %85 = arith.subf %81, %82 : vector<2x4xf32>
    %86 = arith.addf %83, %84 : vector<2x4xf32>
    %87 = tpu.concatenate %85, %86 in 1 : vector<2x4xf32>, vector<2x4xf32> -> vector<2x8xf32>
    %88 = arith.index_cast %c3_i32 : i32 to index
    %c0_52 = arith.constant 0 : index
    %c0_53 = arith.constant 0 : index
    %89 = vector.load %arg5[%88, %c0_52, %c0_53] : memref<8x2x8xf32, #tpu.memory_space<vmem>>, vector<1x2x8xf32>
    %90 = vector.shape_cast %89 : vector<1x2x8xf32> to vector<2x8xf32>
    %91 = vector.shape_cast %87 : vector<2x8xf32> to vector<1x2x8xf32>
    tpu.vector_store %arg5[%88, %c0_52, %c0_53], %91 {strides = array<i32>} : memref<8x2x8xf32, #tpu.memory_space<vmem>>, vector<1x2x8xf32>,
    %c4_i32 = arith.constant 4 : i32
    %92 = arith.index_cast %c4_i32 : i32 to index
    %c0_54 = arith.constant 0 : index
    %c0_55 = arith.constant 0 : index
    %93 = vector.load %arg1[%92, %c0_54, %c0_55] : memref<8x2x4xbf16, #tpu.memory_space<vmem>>, vector<1x2x4xbf16>
    %94 = vector.shape_cast %93 : vector<1x2x4xbf16> to vector<2x4xbf16>
    %95 = arith.index_cast %c4_i32 : i32 to index
    %c0_56 = arith.constant 0 : index
    %c0_57 = arith.constant 0 : index
    %96 = vector.load %arg2[%95, %c0_56, %c0_57] : memref<8x2x4xbf16, #tpu.memory_space<vmem>>, vector<1x2x4xbf16>
    %97 = vector.shape_cast %96 : vector<1x2x4xbf16> to vector<2x4xbf16>
    %98 = arith.index_cast %c4_i32 : i32 to index
    %c0_58 = arith.constant 0 : index
    %c0_59 = arith.constant 0 : index
    %99 = vector.load %arg3[%98, %c0_58, %c0_59] : memref<8x4x4xbf16, #tpu.memory_space<vmem>>, vector<1x4x4xbf16>
    %100 = vector.shape_cast %99 : vector<1x4x4xbf16> to vector<4x4xbf16>
    %101 = arith.index_cast %c4_i32 : i32 to index
    %c0_60 = arith.constant 0 : index
    %c0_61 = arith.constant 0 : index
    %102 = vector.load %arg4[%101, %c0_60, %c0_61] : memref<8x4x4xbf16, #tpu.memory_space<vmem>>, vector<1x4x4xbf16>
    %103 = vector.shape_cast %102 : vector<1x4x4xbf16> to vector<4x4xbf16>
    %cst_62 = arith.constant dense<0.000000e+00> : vector<2x4xf32>
    %104 = tpu.matmul %94, %100, %cst_62 {dimension_numbers = #tpu.dot_dimension_numbers<[1], [0], [0], [1], [0, 0, 1, 1], [], []>} : vector<2x4xbf16>, vector<4x4xbf16>, vector<2x4xf32> -> vector<2x4xf32>
    %cst_63 = arith.constant dense<0.000000e+00> : vector<2x4xf32>
    %105 = tpu.matmul %97, %103, %cst_63 {dimension_numbers = #tpu.dot_dimension_numbers<[1], [0], [0], [1], [0, 0, 1, 1], [], []>} : vector<2x4xbf16>, vector<4x4xbf16>, vector<2x4xf32> -> vector<2x4xf32>
    %cst_64 = arith.constant dense<0.000000e+00> : vector<2x4xf32>
    %106 = tpu.matmul %94, %103, %cst_64 {dimension_numbers = #tpu.dot_dimension_numbers<[1], [0], [0], [1], [0, 0, 1, 1], [], []>} : vector<2x4xbf16>, vector<4x4xbf16>, vector<2x4xf32> -> vector<2x4xf32>
    %cst_65 = arith.constant dense<0.000000e+00> : vector<2x4xf32>
    %107 = tpu.matmul %97, %100, %cst_65 {dimension_numbers = #tpu.dot_dimension_numbers<[1], [0], [0], [1], [0, 0, 1, 1], [], []>} : vector<2x4xbf16>, vector<4x4xbf16>, vector<2x4xf32> -> vector<2x4xf32>
    %108 = arith.subf %104, %105 : vector<2x4xf32>
    %109 = arith.addf %106, %107 : vector<2x4xf32>
    %110 = tpu.concatenate %108, %109 in 1 : vector<2x4xf32>, vector<2x4xf32> -> vector<2x8xf32>
    %111 = arith.index_cast %c4_i32 : i32 to index
    %c0_66 = arith.constant 0 : index
    %c0_67 = arith.constant 0 : index
    %112 = vector.load %arg5[%111, %c0_66, %c0_67] : memref<8x2x8xf32, #tpu.memory_space<vmem>>, vector<1x2x8xf32>
    %113 = vector.shape_cast %112 : vector<1x2x8xf32> to vector<2x8xf32>
    %114 = vector.shape_cast %110 : vector<2x8xf32> to vector<1x2x8xf32>
    tpu.vector_store %arg5[%111, %c0_66, %c0_67], %114 {strides = array<i32>} : memref<8x2x8xf32, #tpu.memory_space<vmem>>, vector<1x2x8xf32>,
    %c5_i32 = arith.constant 5 : i32
    %115 = arith.index_cast %c5_i32 : i32 to index
    %c0_68 = arith.constant 0 : index
    %c0_69 = arith.constant 0 : index
    %116 = vector.load %arg1[%115, %c0_68, %c0_69] : memref<8x2x4xbf16, #tpu.memory_space<vmem>>, vector<1x2x4xbf16>
    %117 = vector.shape_cast %116 : vector<1x2x4xbf16> to vector<2x4xbf16>
    %118 = arith.index_cast %c5_i32 : i32 to index
    %c0_70 = arith.constant 0 : index
    %c0_71 = arith.constant 0 : index
    %119 = vector.load %arg2[%118, %c0_70, %c0_71] : memref<8x2x4xbf16, #tpu.memory_space<vmem>>, vector<1x2x4xbf16>
    %120 = vector.shape_cast %119 : vector<1x2x4xbf16> to vector<2x4xbf16>
    %121 = arith.index_cast %c5_i32 : i32 to index
    %c0_72 = arith.constant 0 : index
    %c0_73 = arith.constant 0 : index
    %122 = vector.load %arg3[%121, %c0_72, %c0_73] : memref<8x4x4xbf16, #tpu.memory_space<vmem>>, vector<1x4x4xbf16>
    %123 = vector.shape_cast %122 : vector<1x4x4xbf16> to vector<4x4xbf16>
    %124 = arith.index_cast %c5_i32 : i32 to index
    %c0_74 = arith.constant 0 : index
    %c0_75 = arith.constant 0 : index
    %125 = vector.load %arg4[%124, %c0_74, %c0_75] : memref<8x4x4xbf16, #tpu.memory_space<vmem>>, vector<1x4x4xbf16>
    %126 = vector.shape_cast %125 : vector<1x4x4xbf16> to vector<4x4xbf16>
    %cst_76 = arith.constant dense<0.000000e+00> : vector<2x4xf32>
    %127 = tpu.matmul %117, %123, %cst_76 {dimension_numbers = #tpu.dot_dimension_numbers<[1], [0], [0], [1], [0, 0, 1, 1], [], []>} : vector<2x4xbf16>, vector<4x4xbf16>, vector<2x4xf32> -> vector<2x4xf32>
    %cst_77 = arith.constant dense<0.000000e+00> : vector<2x4xf32>
    %128 = tpu.matmul %120, %126, %cst_77 {dimension_numbers = #tpu.dot_dimension_numbers<[1], [0], [0], [1], [0, 0, 1, 1], [], []>} : vector<2x4xbf16>, vector<4x4xbf16>, vector<2x4xf32> -> vector<2x4xf32>
    %cst_78 = arith.constant dense<0.000000e+00> : vector<2x4xf32>
    %129 = tpu.matmul %117, %126, %cst_78 {dimension_numbers = #tpu.dot_dimension_numbers<[1], [0], [0], [1], [0, 0, 1, 1], [], []>} : vector<2x4xbf16>, vector<4x4xbf16>, vector<2x4xf32> -> vector<2x4xf32>
    %cst_79 = arith.constant dense<0.000000e+00> : vector<2x4xf32>
    %130 = tpu.matmul %120, %123, %cst_79 {dimension_numbers = #tpu.dot_dimension_numbers<[1], [0], [0], [1], [0, 0, 1, 1], [], []>} : vector<2x4xbf16>, vector<4x4xbf16>, vector<2x4xf32> -> vector<2x4xf32>
    %131 = arith.subf %127, %128 : vector<2x4xf32>
    %132 = arith.addf %129, %130 : vector<2x4xf32>
    %133 = tpu.concatenate %131, %132 in 1 : vector<2x4xf32>, vector<2x4xf32> -> vector<2x8xf32>
    %134 = arith.index_cast %c5_i32 : i32 to index
    %c0_80 = arith.constant 0 : index
    %c0_81 = arith.constant 0 : index
    %135 = vector.load %arg5[%134, %c0_80, %c0_81] : memref<8x2x8xf32, #tpu.memory_space<vmem>>, vector<1x2x8xf32>
    %136 = vector.shape_cast %135 : vector<1x2x8xf32> to vector<2x8xf32>
    %137 = vector.shape_cast %133 : vector<2x8xf32> to vector<1x2x8xf32>
    tpu.vector_store %arg5[%134, %c0_80, %c0_81], %137 {strides = array<i32>} : memref<8x2x8xf32, #tpu.memory_space<vmem>>, vector<1x2x8xf32>,
    %c6_i32 = arith.constant 6 : i32
    %138 = arith.index_cast %c6_i32 : i32 to index
    %c0_82 = arith.constant 0 : index
    %c0_83 = arith.constant 0 : index
    %139 = vector.load %arg1[%138, %c0_82, %c0_83] : memref<8x2x4xbf16, #tpu.memory_space<vmem>>, vector<1x2x4xbf16>
    %140 = vector.shape_cast %139 : vector<1x2x4xbf16> to vector<2x4xbf16>
    %141 = arith.index_cast %c6_i32 : i32 to index
    %c0_84 = arith.constant 0 : index
    %c0_85 = arith.constant 0 : index
    %142 = vector.load %arg2[%141, %c0_84, %c0_85] : memref<8x2x4xbf16, #tpu.memory_space<vmem>>, vector<1x2x4xbf16>
    %143 = vector.shape_cast %142 : vector<1x2x4xbf16> to vector<2x4xbf16>
    %144 = arith.index_cast %c6_i32 : i32 to index
    %c0_86 = arith.constant 0 : index
    %c0_87 = arith.constant 0 : index
    %145 = vector.load %arg3[%144, %c0_86, %c0_87] : memref<8x4x4xbf16, #tpu.memory_space<vmem>>, vector<1x4x4xbf16>
    %146 = vector.shape_cast %145 : vector<1x4x4xbf16> to vector<4x4xbf16>
    %147 = arith.index_cast %c6_i32 : i32 to index
    %c0_88 = arith.constant 0 : index
    %c0_89 = arith.constant 0 : index
    %148 = vector.load %arg4[%147, %c0_88, %c0_89] : memref<8x4x4xbf16, #tpu.memory_space<vmem>>, vector<1x4x4xbf16>
    %149 = vector.shape_cast %148 : vector<1x4x4xbf16> to vector<4x4xbf16>
    %cst_90 = arith.constant dense<0.000000e+00> : vector<2x4xf32>
    %150 = tpu.matmul %140, %146, %cst_90 {dimension_numbers = #tpu.dot_dimension_numbers<[1], [0], [0], [1], [0, 0, 1, 1], [], []>} : vector<2x4xbf16>, vector<4x4xbf16>, vector<2x4xf32> -> vector<2x4xf32>
    %cst_91 = arith.constant dense<0.000000e+00> : vector<2x4xf32>
    %151 = tpu.matmul %143, %149, %cst_91 {dimension_numbers = #tpu.dot_dimension_numbers<[1], [0], [0], [1], [0, 0, 1, 1], [], []>} : vector<2x4xbf16>, vector<4x4xbf16>, vector<2x4xf32> -> vector<2x4xf32>
    %cst_92 = arith.constant dense<0.000000e+00> : vector<2x4xf32>
    %152 = tpu.matmul %140, %149, %cst_92 {dimension_numbers = #tpu.dot_dimension_numbers<[1], [0], [0], [1], [0, 0, 1, 1], [], []>} : vector<2x4xbf16>, vector<4x4xbf16>, vector<2x4xf32> -> vector<2x4xf32>
    %cst_93 = arith.constant dense<0.000000e+00> : vector<2x4xf32>
    %153 = tpu.matmul %143, %146, %cst_93 {dimension_numbers = #tpu.dot_dimension_numbers<[1], [0], [0], [1], [0, 0, 1, 1], [], []>} : vector<2x4xbf16>, vector<4x4xbf16>, vector<2x4xf32> -> vector<2x4xf32>
    %154 = arith.subf %150, %151 : vector<2x4xf32>
    %155 = arith.addf %152, %153 : vector<2x4xf32>
    %156 = tpu.concatenate %154, %155 in 1 : vector<2x4xf32>, vector<2x4xf32> -> vector<2x8xf32>
    %157 = arith.index_cast %c6_i32 : i32 to index
    %c0_94 = arith.constant 0 : index
    %c0_95 = arith.constant 0 : index
    %158 = vector.load %arg5[%157, %c0_94, %c0_95] : memref<8x2x8xf32, #tpu.memory_space<vmem>>, vector<1x2x8xf32>
    %159 = vector.shape_cast %158 : vector<1x2x8xf32> to vector<2x8xf32>
    %160 = vector.shape_cast %156 : vector<2x8xf32> to vector<1x2x8xf32>
    tpu.vector_store %arg5[%157, %c0_94, %c0_95], %160 {strides = array<i32>} : memref<8x2x8xf32, #tpu.memory_space<vmem>>, vector<1x2x8xf32>,
    %c7_i32 = arith.constant 7 : i32
    %161 = arith.index_cast %c7_i32 : i32 to index
    %c0_96 = arith.constant 0 : index
    %c0_97 = arith.constant 0 : index
    %162 = vector.load %arg1[%161, %c0_96, %c0_97] : memref<8x2x4xbf16, #tpu.memory_space<vmem>>, vector<1x2x4xbf16>
    %163 = vector.shape_cast %162 : vector<1x2x4xbf16> to vector<2x4xbf16>
    %164 = arith.index_cast %c7_i32 : i32 to index
    %c0_98 = arith.constant 0 : index
    %c0_99 = arith.constant 0 : index
    %165 = vector.load %arg2[%164, %c0_98, %c0_99] : memref<8x2x4xbf16, #tpu.memory_space<vmem>>, vector<1x2x4xbf16>
    %166 = vector.shape_cast %165 : vector<1x2x4xbf16> to vector<2x4xbf16>
    %167 = arith.index_cast %c7_i32 : i32 to index
    %c0_100 = arith.constant 0 : index
    %c0_101 = arith.constant 0 : index
    %168 = vector.load %arg3[%167, %c0_100, %c0_101] : memref<8x4x4xbf16, #tpu.memory_space<vmem>>, vector<1x4x4xbf16>
    %169 = vector.shape_cast %168 : vector<1x4x4xbf16> to vector<4x4xbf16>
    %170 = arith.index_cast %c7_i32 : i32 to index
    %c0_102 = arith.constant 0 : index
    %c0_103 = arith.constant 0 : index
    %171 = vector.load %arg4[%170, %c0_102, %c0_103] : memref<8x4x4xbf16, #tpu.memory_space<vmem>>, vector<1x4x4xbf16>
    %172 = vector.shape_cast %171 : vector<1x4x4xbf16> to vector<4x4xbf16>
    %cst_104 = arith.constant dense<0.000000e+00> : vector<2x4xf32>
    %173 = tpu.matmul %163, %169, %cst_104 {dimension_numbers = #tpu.dot_dimension_numbers<[1], [0], [0], [1], [0, 0, 1, 1], [], []>} : vector<2x4xbf16>, vector<4x4xbf16>, vector<2x4xf32> -> vector<2x4xf32>
    %cst_105 = arith.constant dense<0.000000e+00> : vector<2x4xf32>
    %174 = tpu.matmul %166, %172, %cst_105 {dimension_numbers = #tpu.dot_dimension_numbers<[1], [0], [0], [1], [0, 0, 1, 1], [], []>} : vector<2x4xbf16>, vector<4x4xbf16>, vector<2x4xf32> -> vector<2x4xf32>
    %cst_106 = arith.constant dense<0.000000e+00> : vector<2x4xf32>
    %175 = tpu.matmul %163, %172, %cst_106 {dimension_numbers = #tpu.dot_dimension_numbers<[1], [0], [0], [1], [0, 0, 1, 1], [], []>} : vector<2x4xbf16>, vector<4x4xbf16>, vector<2x4xf32> -> vector<2x4xf32>
    %cst_107 = arith.constant dense<0.000000e+00> : vector<2x4xf32>
    %176 = tpu.matmul %166, %169, %cst_107 {dimension_numbers = #tpu.dot_dimension_numbers<[1], [0], [0], [1], [0, 0, 1, 1], [], []>} : vector<2x4xbf16>, vector<4x4xbf16>, vector<2x4xf32> -> vector<2x4xf32>
    %177 = arith.subf %173, %174 : vector<2x4xf32>
    %178 = arith.addf %175, %176 : vector<2x4xf32>
    %179 = tpu.concatenate %177, %178 in 1 : vector<2x4xf32>, vector<2x4xf32> -> vector<2x8xf32>
    %180 = arith.index_cast %c7_i32 : i32 to index
    %c0_108 = arith.constant 0 : index
    %c0_109 = arith.constant 0 : index
    %181 = vector.load %arg5[%180, %c0_108, %c0_109] : memref<8x2x8xf32, #tpu.memory_space<vmem>>, vector<1x2x8xf32>
    %182 = vector.shape_cast %181 : vector<1x2x8xf32> to vector<2x8xf32>
    %183 = vector.shape_cast %179 : vector<2x8xf32> to vector<1x2x8xf32>
    tpu.vector_store %arg5[%180, %c0_108, %c0_109], %183 {strides = array<i32>} : memref<8x2x8xf32, #tpu.memory_space<vmem>>, vector<1x2x8xf32>,
    %c8_i32 = arith.constant 8 : i32
    return
  }
  func.func @transform_0(%arg0: i32) -> (i32, i32, i32) {
    %c0_i32 = arith.constant 0 : i32
    %c0_i32_0 = arith.constant 0 : i32
    %c0_i32_1 = arith.constant 0 : i32
    return %arg0, %c0_i32, %c0_i32_0 : i32, i32, i32
  }
  func.func @transform_1(%arg0: i32) -> (i32, i32, i32) {
    %c0_i32 = arith.constant 0 : i32
    %c0_i32_0 = arith.constant 0 : i32
    %c0_i32_1 = arith.constant 0 : i32
    return %arg0, %c0_i32, %c0_i32_0 : i32, i32, i32
  }
  func.func @transform_2(%arg0: i32) -> (i32, i32, i32) {
    %c0_i32 = arith.constant 0 : i32
    %c0_i32_0 = arith.constant 0 : i32
    %c0_i32_1 = arith.constant 0 : i32
    return %arg0, %c0_i32, %c0_i32_0 : i32, i32, i32
  }
  func.func @transform_3(%arg0: i32) -> (i32, i32, i32) {
    %c0_i32 = arith.constant 0 : i32
    %c0_i32_0 = arith.constant 0 : i32
    %c0_i32_1 = arith.constant 0 : i32
    return %arg0, %c0_i32, %c0_i32_0 : i32, i32, i32
  }
  func.func @transform_4(%arg0: i32) -> (i32, i32, i32) {
    %c0_i32 = arith.constant 0 : i32
    %c0_i32_0 = arith.constant 0 : i32
    %c0_i32_1 = arith.constant 0 : i32
    return %arg0, %c0_i32, %c0_i32_0 : i32, i32, i32
  }
}

</mosaic_0001>

<llo_original>
// kernel: reverse.1
$region0: #{reverse.1}
  #allocation0 [shape = 's32[1]{0}', space=sflag, size = 0x4, scoped, tag = 'scoped memory for reverse.1']
  %s0 = inlined_call_operand.vmem [shape: f32[2,4,7], index: 0, kind: input, shape index: {}]
  %s1 = inlined_call_operand.vmem [shape: f32[2,4,7], index: 1, kind: output, shape index: {}]
  %s2 = scalar_lea.vmem %s0, 12
  %v3 = vld [vmem:[%s2] sm:$0x3]
  %4 = vst [vmem:[%s1] sm:$0x3] %v3
  %s5 = scalar_lea.vmem %s0, 10
  %v6 = vld [vmem:[%s5] sm:$0x3]
  %s7 = scalar_lea.vmem %s1, 2
  %8 = vst [vmem:[%s7] sm:$0x3] %v6
  %s9 = scalar_lea.vmem %s0, 8
  %v10 = vld [vmem:[%s9] sm:$0x3]
  %s11 = scalar_lea.vmem %s1, 4
  %12 = vst [vmem:[%s11] sm:$0x3] %v10
  %s13 = scalar_lea.vmem %s0, 6
  %v14 = vld [vmem:[%s13] sm:$0x3]
  %s15 = scalar_lea.vmem %s1, 6
  %16 = vst [vmem:[%s15] sm:$0x3] %v14
  %s17 = scalar_lea.vmem %s0, 4
  %v18 = vld [vmem:[%s17] sm:$0x3]
  %s19 = scalar_lea.vmem %s1, 8
  %20 = vst [vmem:[%s19] sm:$0x3] %v18
  %s21 = scalar_lea.vmem %s0, 2
  %v22 = vld [vmem:[%s21] sm:$0x3]
  %s23 = scalar_lea.vmem %s1, 10
  %24 = vst [vmem:[%s23] sm:$0x3] %v22
  %v25 = vld [vmem:[%s0] sm:$0x3]
  %s26 = scalar_lea.vmem %s1, 12
  %27 = vst [vmem:[%s26] sm:$0x3] %v25

// kernel: spectral_conv1d.1
$region0: #{spectral_conv1d.1}
  #allocation0 [shape = 'u32[]', space=smem, size = 0x4, offset = 0x4, fixed_abs, tag = 'smem constant byte address 0x4 - core index']
  #allocation1 [shape = 'u32[144,128]{1,0:T(1,128)}', space=vmem, size = 0x12000, scoped, tag = 'internal scratch']
  %s0 = inlined_call_operand.vmem [shape: bf16[8,2,4], index: 0, kind: input, shape index: {}]
  %s1 = inlined_call_operand.vmem [shape: bf16[8,2,4], index: 1, kind: input, shape index: {}]
  %s2 = inlined_call_operand.vmem [shape: bf16[8,4,4], index: 2, kind: input, shape index: {}]
  %s3 = inlined_call_operand.vmem [shape: bf16[8,4,4], index: 3, kind: input, shape index: {}]
  %s4 = inlined_call_operand.vmem [shape: f32[8,2,8], index: 4, kind: output, shape index: {}]
  %s5 = sld [smem:[#allocation0]]
  $region26: #{spectral_conv1d.1} parent=0
    _
  %s7 = ssub.s32 1, %s5
  %s8 = scalar_select 0, %s7, %s5
  // Predicated region
  $region2: #{spectral_conv1d.1} parent=0 // pred_check
    _
  $region3: #{spectral_conv1d.1} parent=0 // pred_check_branch
    %10 = sbr.rel (0) target = $region5
  $region4: #{spectral_conv1d.1} parent=0 // pred_region
    _
  $region5: #{spectral_conv1d.1} parent=0 // pred_fallthru
    _
  // Predicated region
  $region6: #{spectral_conv1d.1} parent=0 // pred_check
    _
  $region7: #{spectral_conv1d.1} parent=0 // pred_check_branch
    %12 = sbr.rel (0) target = $region9
  $region8: #{spectral_conv1d.1} parent=0 // pred_region
    _
  $region9: #{spectral_conv1d.1} parent=0 // pred_fallthru
    _
  // Predicated region
  $region10: #{spectral_conv1d.1} parent=0 // pred_check
    _
  $region11: #{spectral_conv1d.1} parent=0 // pred_check_branch
    %14 = sbr.rel (0) target = $region13
  $region12: #{spectral_conv1d.1} parent=0 // pred_region
    _
  $region13: #{spectral_conv1d.1} parent=0 // pred_fallthru
    _
  // Predicated region
  $region14: #{spectral_conv1d.1} parent=0 // pred_check
    _
  $region15: #{spectral_conv1d.1} parent=0 // pred_check_branch
    %16 = sbr.rel (0) target = $region17
  $region16: #{spectral_conv1d.1} parent=0 // pred_region
    _
  $region17: #{spectral_conv1d.1} parent=0 // pred_fallthru
    _
  %v18 = vld [vmem:[%s0] sm:$0x1]
  %v19 = vld [vmem:[%s1] sm:$0x1]
  %v20 = vld [vmem:[%s2] sm:$0x3]
  %v21 = vld [vmem:[%s3] sm:$0x3]
  %vm22 = vcmask 31744
  %v24 = vsel %vm22, %v18, 0
  %vm26 = vcmask 1041408
  %v28 = vsel %vm26, %v20, 0
  %30 = vmatprep.subr.bf16.mxu0 0
  %31 = vmatpush1.bf16.msra.mxu0 0
  %32 = vmatprep.subr.bf16.mxu0 0
  %33 = vmatpush1.bf16.msra.mxu0 0
  %34 = vmatprep.subr.bf16.mxu0 0
  %35 = vmatpush1.bf16.msra.mxu0 0
  %36 = vmatprep.subr.bf16.mxu0 0
  %37 = vmatpush1.bf16.msra.mxu0 0
  %38 = vmatprep.subr.bf16.mxu0 0
  %39 = vmatpush1.bf16.msra.mxu0 0
  %40 = vmatprep.subr.bf16.mxu0 0
  %41 = vmatpush1.bf16.msra.mxu0 0
  %42 = vmatprep.subr.bf16.mxu0 0
  %43 = vmatpush1.bf16.msra.mxu0 0
  %44 = vmatprep.subr.bf16.mxu0 0
  %45 = vmatpush1.bf16.msra.mxu0 %v28
  %46 = vmatprep.subr.bf16.mxu0 0
  %47 = vmatpush2.bf16.msra.mxu0 0
  %48 = vmatprep.subr.bf16.mxu0 0
  %49 = vmatpush2.bf16.msra.mxu0 0
  %50 = vmatprep.subr.bf16.mxu0 0
  %51 = vmatpush2.bf16.msra.mxu0 0
  %52 = vmatprep.subr.bf16.mxu0 0
  %53 = vmatpush2.bf16.msra.mxu0 0
  %54 = vmatprep.subr.bf16.mxu0 0
  %55 = vmatpush2.bf16.msra.mxu0 0
  %56 = vmatprep.subr.bf16.mxu0 0
  %57 = vmatpush2.bf16.msra.mxu0 0
  %58 = vmatprep.subr.bf16.mxu0 0
  %59 = vmatpush2.bf16.msra.mxu0 0
  %60 = vmatprep.subr.bf16.mxu0 0
  %61 = vmatpush2.bf16.msra.mxu0 0
  %62 = vmatprep.mubr.bf16.mxu0 0
  %63 = vmatmul.mubr.bf16.gmra.mxu0 %v24
  %v64 = vpop.f32.mrf.mxu0
  %v65 = vadd.f32 0.0, %v64
  %v66 = vpop.f32.mrf.mxu0
  %v67 = vpop.f32.mrf.mxu0
  %v68 = vpop.f32.mrf.mxu0
  %69 = vdwg.mxu0
  %v71 = vsel %vm22, %v19, 0
  %v74 = vsel %vm26, %v21, 0
  %76 = vmatprep.subr.bf16.mxu0 0
  %77 = vmatpush1.bf16.msra.mxu0 0
  %78 = vmatprep.subr.bf16.mxu0 0
  %79 = vmatpush1.bf16.msra.mxu0 0
  %80 = vmatprep.subr.bf16.mxu0 0
  %81 = vmatpush1.bf16.msra.mxu0 0
  %82 = vmatprep.subr.bf16.mxu0 0
  %83 = vmatpush1.bf16.msra.mxu0 0
  %84 = vmatprep.subr.bf16.mxu0 0
  %85 = vmatpush1.bf16.msra.mxu0 0
  %86 = vmatprep.subr.bf16.mxu0 0
  %87 = vmatpush1.bf16.msra.mxu0 0
  %88 = vmatprep.subr.bf16.mxu0 0
  %89 = vmatpush1.bf16.msra.mxu0 0
  %90 = vmatprep.subr.bf16.mxu0 0
  %91 = vmatpush1.bf16.msra.mxu0 %v74
  %92 = vmatprep.subr.bf16.mxu0 0
  %93 = vmatpush2.bf16.msra.mxu0 0
  %94 = vmatprep.subr.bf16.mxu0 0
  %95 = vmatpush2.bf16.msra.mxu0 0
  %96 = vmatprep.subr.bf16.mxu0 0
  %97 = vmatpush2.bf16.msra.mxu0 0
  %98 = vmatprep.subr.bf16.mxu0 0
  %99 = vmatpush2.bf16.msra.mxu0 0
  %100 = vmatprep.subr.bf16.mxu0 0
  %101 = vmatpush2.bf16.msra.mxu0 0
  %102 = vmatprep.subr.bf16.mxu0 0
  %103 = vmatpush2.bf16.msra.mxu0 0
  %104 = vmatprep.subr.bf16.mxu0 0
  %105 = vmatpush2.bf16.msra.mxu0 0
  %106 = vmatprep.subr.bf16.mxu0 0
  %107 = vmatpush2.bf16.msra.mxu0 0
  %108 = vmatprep.mubr.bf16.mxu0 0
  %109 = vmatmul.mubr.bf16.gmra.mxu0 %v71
  %v110 = vpop.f32.mrf.mxu0
  %v111 = vadd.f32 0.0, %v110
  %v112 = vpop.f32.mrf.mxu0
  %v113 = vpop.f32.mrf.mxu0
  %v114 = vpop.f32.mrf.mxu0
  %115 = vdwg.mxu0
  %116 = vmatprep.subr.bf16.mxu0 0
  %117 = vmatpush1.bf16.msra.mxu0 0
  %118 = vmatprep.subr.bf16.mxu0 0
  %119 = vmatpush1.bf16.msra.mxu0 0
  %120 = vmatprep.subr.bf16.mxu0 0
  %121 = vmatpush1.bf16.msra.mxu0 0
  %122 = vmatprep.subr.bf16.mxu0 0
  %123 = vmatpush1.bf16.msra.mxu0 0
  %124 = vmatprep.subr.bf16.mxu0 0
  %125 = vmatpush1.bf16.msra.mxu0 0
  %126 = vmatprep.subr.bf16.mxu0 0
  %127 = vmatpush1.bf16.msra.mxu0 0
  %128 = vmatprep.subr.bf16.mxu0 0
  %129 = vmatpush1.bf16.msra.mxu0 0
  %130 = vmatprep.subr.bf16.mxu0 0
  %131 = vmatpush1.bf16.msra.mxu0 %v28
  %132 = vmatprep.subr.bf16.mxu0 0
  %133 = vmatpush2.bf16.msra.mxu0 0
  %134 = vmatprep.subr.bf16.mxu0 0
  %135 = vmatpush2.bf16.msra.mxu0 0
  %136 = vmatprep.subr.bf16.mxu0 0
  %137 = vmatpush2.bf16.msra.mxu0 0
  %138 = vmatprep.subr.bf16.mxu0 0
  %139 = vmatpush2.bf16.msra.mxu0 0
  %140 = vmatprep.subr.bf16.mxu0 0
  %141 = vmatpush2.bf16.msra.mxu0 0
  %142 = vmatprep.subr.bf16.mxu0 0
  %143 = vmatpush2.bf16.msra.mxu0 0
  %144 = vmatprep.subr.bf16.mxu0 0
  %145 = vmatpush2.bf16.msra.mxu0 0
  %146 = vmatprep.subr.bf16.mxu0 0
  %147 = vmatpush2.bf16.msra.mxu0 0
  %148 = vmatprep.mubr.bf16.mxu0 0
  %149 = vmatmul.mubr.bf16.gmra.mxu0 %v71
  %v150 = vpop.f32.mrf.mxu0
  %v151 = vadd.f32 0.0, %v150
  %v152 = vpop.f32.mrf.mxu0
  %v153 = vpop.f32.mrf.mxu0
  %v154 = vpop.f32.mrf.mxu0
  %155 = vdwg.mxu0
  %v156 = vsub.f32 %v65, %v111
  %157 = vmatprep.subr.bf16.mxu0 0
  %158 = vmatpush1.bf16.msra.mxu0 0
  %159 = vmatprep.subr.bf16.mxu0 0
  %160 = vmatpush1.bf16.msra.mxu0 0
  %161 = vmatprep.subr.bf16.mxu0 0
  %162 = vmatpush1.bf16.msra.mxu0 0
  %163 = vmatprep.subr.bf16.mxu0 0
  %164 = vmatpush1.bf16.msra.mxu0 0
  %165 = vmatprep.subr.bf16.mxu0 0
  %166 = vmatpush1.bf16.msra.mxu0 0
  %167 = vmatprep.subr.bf16.mxu0 0
  %168 = vmatpush1.bf16.msra.mxu0 0
  %169 = vmatprep.subr.bf16.mxu0 0
  %170 = vmatpush1.bf16.msra.mxu0 0
  %171 = vmatprep.subr.bf16.mxu0 0
  %172 = vmatpush1.bf16.msra.mxu0 %v74
  %173 = vmatprep.subr.bf16.mxu0 0
  %174 = vmatpush2.bf16.msra.mxu0 0
  %175 = vmatprep.subr.bf16.mxu0 0
  %176 = vmatpush2.bf16.msra.mxu0 0
  %177 = vmatprep.subr.bf16.mxu0 0
  %178 = vmatpush2.bf16.msra.mxu0 0
  %179 = vmatprep.subr.bf16.mxu0 0
  %180 = vmatpush2.bf16.msra.mxu0 0
  %181 = vmatprep.subr.bf16.mxu0 0
  %182 = vmatpush2.bf16.msra.mxu0 0
  %183 = vmatprep.subr.bf16.mxu0 0
  %184 = vmatpush2.bf16.msra.mxu0 0
  %185 = vmatprep.subr.bf16.mxu0 0
  %186 = vmatpush2.bf16.msra.mxu0 0
  %187 = vmatprep.subr.bf16.mxu0 0
  %188 = vmatpush2.bf16.msra.mxu0 0
  %189 = vmatprep.mubr.bf16.mxu0 0
  %190 = vmatmul.mubr.bf16.gmra.mxu0 %v24
  %v191 = vpop.f32.mrf.mxu0
  %v192 = vadd.f32 %v151, %v191
  %v193 = vpop.f32.mrf.mxu0
  %v194 = vpop.f32.mrf.mxu0
  %v195 = vpop.f32.mrf.mxu0
  %196 = vdwg.mxu0
  %198 = vrot.lane.b32.xlu0 %v192, 4
  %v199 = vpop.permute.xlu0 %198
  %v201 = vsel %vm22, %v156, %v199
  %vm202 = vcmask 58368
  %203 = vst.msk [vmem:[%s4] sm:$0x3] %vm202, %v201
  %s204 = scalar_lea.vmem %s0, 1
  %v205 = vld [vmem:[%s204] sm:$0x1]
  %s206 = scalar_lea.vmem %s1, 1
  %v207 = vld [vmem:[%s206] sm:$0x1]
  %s208 = scalar_lea.vmem %s2, 2
  %v209 = vld [vmem:[%s208] sm:$0x3]
  %s210 = scalar_lea.vmem %s3, 2
  %v211 = vld [vmem:[%s210] sm:$0x3]
  %v213 = vsel %vm22, %v205, 0
  %v216 = vsel %vm26, %v209, 0
  %218 = vmatprep.subr.bf16.mxu0 0
  %219 = vmatpush1.bf16.msra.mxu0 0
  %220 = vmatprep.subr.bf16.mxu0 0
  %221 = vmatpush1.bf16.msra.mxu0 0
  %222 = vmatprep.subr.bf16.mxu0 0
  %223 = vmatpush1.bf16.msra.mxu0 0
  %224 = vmatprep.subr.bf16.mxu0 0
  %225 = vmatpush1.bf16.msra.mxu0 0
  %226 = vmatprep.subr.bf16.mxu0 0
  %227 = vmatpush1.bf16.msra.mxu0 0
  %228 = vmatprep.subr.bf16.mxu0 0
  %229 = vmatpush1.bf16.msra.mxu0 0
  %230 = vmatprep.subr.bf16.mxu0 0
  %231 = vmatpush1.bf16.msra.mxu0 0
  %232 = vmatprep.subr.bf16.mxu0 0
  %233 = vmatpush1.bf16.msra.mxu0 %v216
  %234 = vmatprep.subr.bf16.mxu0 0
  %235 = vmatpush2.bf16.msra.mxu0 0
  %236 = vmatprep.subr.bf16.mxu0 0
  %237 = vmatpush2.bf16.msra.mxu0 0
  %238 = vmatprep.subr.bf16.mxu0 0
  %239 = vmatpush2.bf16.msra.mxu0 0
  %240 = vmatprep.subr.bf16.mxu0 0
  %241 = vmatpush2.bf16.msra.mxu0 0
  %242 = vmatprep.subr.bf16.mxu0 0
  %243 = vmatpush2.bf16.msra.mxu0 0
  %244 = vmatprep.subr.bf16.mxu0 0
  %245 = vmatpush2.bf16.msra.mxu0 0
  %246 = vmatprep.subr.bf16.mxu0 0
  %247 = vmatpush2.bf16.msra.mxu0 0
  %248 = vmatprep.subr.bf16.mxu0 0
  %249 = vmatpush2.bf16.msra.mxu0 0
  %250 = vmatprep.mubr.bf16.mxu0 0
  %251 = vmatmul.mubr.bf16.gmra.mxu0 %v213
  %v252 = vpop.f32.mrf.mxu0
  %v253 = vadd.f32 0.0, %v252
  %v254 = vpop.f32.mrf.mxu0
  %v255 = vpop.f32.mrf.mxu0
  %v256 = vpop.f32.mrf.mxu0
  %257 = vdwg.mxu0
  %v259 = vsel %vm22, %v207, 0
  %v262 = vsel %vm26, %v211, 0
  %264 = vmatprep.subr.bf16.mxu0 0
  %265 = vmatpush1.bf16.msra.mxu0 0
  %266 = vmatprep.subr.bf16.mxu0 0
  %267 = vmatpush1.bf16.msra.mxu0 0
  %268 = vmatprep.subr.bf16.mxu0 0
  %269 = vmatpush1.bf16.msra.mxu0 0
  %270 = vmatprep.subr.bf16.mxu0 0
  %271 = vmatpush1.bf16.msra.mxu0 0
  %272 = vmatprep.subr.bf16.mxu0 0
  %273 = vmatpush1.bf16.msra.mxu0 0
  %274 = vmatprep.subr.bf16.mxu0 0
  %275 = vmatpush1.bf16.msra.mxu0 0
  %276 = vmatprep.subr.bf16.mxu0 0
  %277 = vmatpush1.bf16.msra.mxu0 0
  %278 = vmatprep.subr.bf16.mxu0 0
  %279 = vmatpush1.bf16.msra.mxu0 %v262
  %280 = vmatprep.subr.bf16.mxu0 0
  %281 = vmatpush2.bf16.msra.mxu0 0
  %282 = vmatprep.subr.bf16.mxu0 0
  %283 = vmatpush2.bf16.msra.mxu0 0
  %284 = vmatprep.subr.bf16.mxu0 0
  %285 = vmatpush2.bf16.msra.mxu0 0
  %286 = vmatprep.subr.bf16.mxu0 0
  %287 = vmatpush2.bf16.msra.mxu0 0
  %288 = vmatprep.subr.bf16.mxu0 0
  %289 = vmatpush2.bf16.msra.mxu0 0
  %290 = vmatprep.subr.bf16.mxu0 0
  %291 = vmatpush2.bf16.msra.mxu0 0
  %292 = vmatprep.subr.bf16.mxu0 0
  %293 = vmatpush2.bf16.msra.mxu0 0
  %294 = vmatprep.subr.bf16.mxu0 0
  %295 = vmatpush2.bf16.msra.mxu0 0
  %296 = vmatprep.mubr.bf16.mxu0 0
  %297 = vmatmul.mubr.bf16.gmra.mxu0 %v259
  %v298 = vpop.f32.mrf.mxu0
  %v299 = vadd.f32 0.0, %v298
  %v300 = vpop.f32.mrf.mxu0
  %v301 = vpop.f32.mrf.mxu0
  %v302 = vpop.f32.mrf.mxu0
  %303 = vdwg.mxu0
  %304 = vmatprep.subr.bf16.mxu0 0
  %305 = vmatpush1.bf16.msra.mxu0 0
  %306 = vmatprep.subr.bf16.mxu0 0
  %307 = vmatpush1.bf16.msra.mxu0 0
  %308 = vmatprep.subr.bf16.mxu0 0
  %309 = vmatpush1.bf16.msra.mxu0 0
  %310 = vmatprep.subr.bf16.mxu0 0
  %311 = vmatpush1.bf16.msra.mxu0 0
  %312 = vmatprep.subr.bf16.mxu0 0
  %313 = vmatpush1.bf16.msra.mxu0 0
  %314 = vmatprep.subr.bf16.mxu0 0
  %315 = vmatpush1.bf16.msra.mxu0 0
  %316 = vmatprep.subr.bf16.mxu0 0
  %317 = vmatpush1.bf16.msra.mxu0 0
  %318 = vmatprep.subr.bf16.mxu0 0
  %319 = vmatpush1.bf16.msra.mxu0 %v216
  %320 = vmatprep.subr.bf16.mxu0 0
  %321 = vmatpush2.bf16.msra.mxu0 0
  %322 = vmatprep.subr.bf16.mxu0 0
  %323 = vmatpush2.bf16.msra.mxu0 0
  %324 = vmatprep.subr.bf16.mxu0 0
  %325 = vmatpush2.bf16.msra.mxu0 0
  %326 = vmatprep.subr.bf16.mxu0 0
  %327 = vmatpush2.bf16.msra.mxu0 0
  %328 = vmatprep.subr.bf16.mxu0 0
  %329 = vmatpush2.bf16.msra.mxu0 0
  %330 = vmatprep.subr.bf16.mxu0 0
  %331 = vmatpush2.bf16.msra.mxu0 0
  %332 = vmatprep.subr.bf16.mxu0 0
  %333 = vmatpush2.bf16.msra.mxu0 0
  %334 = vmatprep.subr.bf16.mxu0 0
  %335 = vmatpush2.bf16.msra.mxu0 0
  %336 = vmatprep.mubr.bf16.mxu0 0
  %337 = vmatmul.mubr.bf16.gmra.mxu0 %v259
  %v338 = vpop.f32.mrf.mxu0
  %v339 = vadd.f32 0.0, %v338
  %v340 = vpop.f32.mrf.mxu0
  %v341 = vpop.f32.mrf.mxu0
  %v342 = vpop.f32.mrf.mxu0
  %343 = vdwg.mxu0
  %v344 = vsub.f32 %v253, %v299
  %345 = vmatprep.subr.bf16.mxu0 0
  %346 = vmatpush1.bf16.msra.mxu0 0
  %347 = vmatprep.subr.bf16.mxu0 0
  %348 = vmatpush1.bf16.msra.mxu0 0
  %349 = vmatprep.subr.bf16.mxu0 0
  %350 = vmatpush1.bf16.msra.mxu0 0
  %351 = vmatprep.subr.bf16.mxu0 0
  %352 = vmatpush1.bf16.msra.mxu0 0
  %353 = vmatprep.subr.bf16.mxu0 0
  %354 = vmatpush1.bf16.msra.mxu0 0
  %355 = vmatprep.subr.bf16.mxu0 0
  %356 = vmatpush1.bf16.msra.mxu0 0
  %357 = vmatprep.subr.bf16.mxu0 0
  %358 = vmatpush1.bf16.msra.mxu0 0
  %359 = vmatprep.subr.bf16.mxu0 0
  %360 = vmatpush1.bf16.msra.mxu0 %v262
  %361 = vmatprep.subr.bf16.mxu0 0
  %362 = vmatpush2.bf16.msra.mxu0 0
  %363 = vmatprep.subr.bf16.mxu0 0
  %364 = vmatpush2.bf16.msra.mxu0 0
  %365 = vmatprep.subr.bf16.mxu0 0
  %366 = vmatpush2.bf16.msra.mxu0 0
  %367 = vmatprep.subr.bf16.mxu0 0
  %368 = vmatpush2.bf16.msra.mxu0 0
  %369 = vmatprep.subr.bf16.mxu0 0
  %370 = vmatpush2.bf16.msra.mxu0 0
  %371 = vmatprep.subr.bf16.mxu0 0
  %372 = vmatpush2.bf16.msra.mxu0 0
  %373 = vmatprep.subr.bf16.mxu0 0
  %374 = vmatpush2.bf16.msra.mxu0 0
  %375 = vmatprep.subr.bf16.mxu0 0
  %376 = vmatpush2.bf16.msra.mxu0 0
  %377 = vmatprep.mubr.bf16.mxu0 0
  %378 = vmatmul.mubr.bf16.gmra.mxu0 %v213
  %v379 = vpop.f32.mrf.mxu0
  %v380 = vadd.f32 %v339, %v379
  %v381 = vpop.f32.mrf.mxu0
  %v382 = vpop.f32.mrf.mxu0
  %v383 = vpop.f32.mrf.mxu0
  %384 = vdwg.mxu0
  %386 = vrot.lane.b32.xlu0 %v380, 4
  %v387 = vpop.permute.xlu0 %386
  %v389 = vsel %vm22, %v344, %v387
  %s390 = scalar_lea.vmem %s4, 2
  %391 = vst.msk [vmem:[%s390] sm:$0x3] %vm202, %v389
  %s392 = scalar_lea.vmem %s0, 2
  %v393 = vld [vmem:[%s392] sm:$0x1]
  %s394 = scalar_lea.vmem %s1, 2
  %v395 = vld [vmem:[%s394] sm:$0x1]
  %s396 = scalar_lea.vmem %s2, 4
  %v397 = vld [vmem:[%s396] sm:$0x3]
  %s398 = scalar_lea.vmem %s3, 4
  %v399 = vld [vmem:[%s398] sm:$0x3]
  %v401 = vsel %vm22, %v393, 0
  %v404 = vsel %vm26, %v397, 0
  %406 = vmatprep.subr.bf16.mxu0 0
  %407 = vmatpush1.bf16.msra.mxu0 0
  %408 = vmatprep.subr.bf16.mxu0 0
  %409 = vmatpush1.bf16.msra.mxu0 0
  %410 = vmatprep.subr.bf16.mxu0 0
  %411 = vmatpush1.bf16.msra.mxu0 0
  %412 = vmatprep.subr.bf16.mxu0 0
  %413 = vmatpush1.bf16.msra.mxu0 0
  %414 = vmatprep.subr.bf16.mxu0 0
  %415 = vmatpush1.bf16.msra.mxu0 0
  %416 = vmatprep.subr.bf16.mxu0 0
  %417 = vmatpush1.bf16.msra.mxu0 0
  %418 = vmatprep.subr.bf16.mxu0 0
  %419 = vmatpush1.bf16.msra.mxu0 0
  %420 = vmatprep.subr.bf16.mxu0 0
  %421 = vmatpush1.bf16.msra.mxu0 %v404
  %422 = vmatprep.subr.bf16.mxu0 0
  %423 = vmatpush2.bf16.msra.mxu0 0
  %424 = vmatprep.subr.bf16.mxu0 0
  %425 = vmatpush2.bf16.msra.mxu0 0
  %426 = vmatprep.subr.bf16.mxu0 0
  %427 = vmatpush2.bf16.msra.mxu0 0
  %428 = vmatprep.subr.bf16.mxu0 0
  %429 = vmatpush2.bf16.msra.mxu0 0
  %430 = vmatprep.subr.bf16.mxu0 0
  %431 = vmatpush2.bf16.msra.mxu0 0
  %432 = vmatprep.subr.bf16.mxu0 0
  %433 = vmatpush2.bf16.msra.mxu0 0
  %434 = vmatprep.subr.bf16.mxu0 0
  %435 = vmatpush2.bf16.msra.mxu0 0
  %436 = vmatprep.subr.bf16.mxu0 0
  %437 = vmatpush2.bf16.msra.mxu0 0
  %438 = vmatprep.mubr.bf16.mxu0 0
  %439 = vmatmul.mubr.bf16.gmra.mxu0 %v401
  %v440 = vpop.f32.mrf.mxu0
  %v441 = vadd.f32 0.0, %v440
  %v442 = vpop.f32.mrf.mxu0
  %v443 = vpop.f32.mrf.mxu0
  %v444 = vpop.f32.mrf.mxu0
  %445 = vdwg.mxu0
  %v447 = vsel %vm22, %v395, 0
  %v450 = vsel %vm26, %v399, 0
  %452 = vmatprep.subr.bf16.mxu0 0
  %453 = vmatpush1.bf16.msra.mxu0 0
  %454 = vmatprep.subr.bf16.mxu0 0
  %455 = vmatpush1.bf16.msra.mxu0 0
  %456 = vmatprep.subr.bf16.mxu0 0
  %457 = vmatpush1.bf16.msra.mxu0 0
  %458 = vmatprep.subr.bf16.mxu0 0
  %459 = vmatpush1.bf16.msra.mxu0 0
  %460 = vmatprep.subr.bf16.mxu0 0
  %461 = vmatpush1.bf16.msra.mxu0 0
  %462 = vmatprep.subr.bf16.mxu0 0
  %463 = vmatpush1.bf16.msra.mxu0 0
  %464 = vmatprep.subr.bf16.mxu0 0
  %465 = vmatpush1.bf16.msra.mxu0 0
  %466 = vmatprep.subr.bf16.mxu0 0
  %467 = vmatpush1.bf16.msra.mxu0 %v450
  %468 = vmatprep.subr.bf16.mxu0 0
  %469 = vmatpush2.bf16.msra.mxu0 0
  %470 = vmatprep.subr.bf16.mxu0 0
  %471 = vmatpush2.bf16.msra.mxu0 0
  %472 = vmatprep.subr.bf16.mxu0 0
  %473 = vmatpush2.bf16.msra.mxu0 0
  %474 = vmatprep.subr.bf16.mxu0 0
  %475 = vmatpush2.bf16.msra.mxu0 0
  %476 = vmatprep.subr.bf16.mxu0 0
  %477 = vmatpush2.bf16.msra.mxu0 0
  %478 = vmatprep.subr.bf16.mxu0 0
  %479 = vmatpush2.bf16.msra.mxu0 0
  %480 = vmatprep.subr.bf16.mxu0 0
  %481 = vmatpush2.bf16.msra.mxu0 0
  %482 = vmatprep.subr.bf16.mxu0 0
  %483 = vmatpush2.bf16.msra.mxu0 0
  %484 = vmatprep.mubr.bf16.mxu0 0
  %485 = vmatmul.mubr.bf16.gmra.mxu0 %v447
  %v486 = vpop.f32.mrf.mxu0
  %v487 = vadd.f32 0.0, %v486
  %v488 = vpop.f32.mrf.mxu0
  %v489 = vpop.f32.mrf.mxu0
  %v490 = vpop.f32.mrf.mxu0
  %491 = vdwg.mxu0
  %492 = vmatprep.subr.bf16.mxu0 0
  %493 = vmatpush1.bf16.msra.mxu0 0
  %494 = vmatprep.subr.bf16.mxu0 0
  %495 = vmatpush1.bf16.msra.mxu0 0
  %496 = vmatprep.subr.bf16.mxu0 0
  %497 = vmatpush1.bf16.msra.mxu0 0
  %498 = vmatprep.subr.bf16.mxu0 0
  %499 = vmatpush1.bf16.msra.mxu0 0
  %500 = vmatprep.subr.bf16.mxu0 0
  %501 = vmatpush1.bf16.msra.mxu0 0
  %502 = vmatprep.subr.bf16.mxu0 0
  %503 = vmatpush1.bf16.msra.mxu0 0
  %504 = vmatprep.subr.bf16.mxu0 0
  %505 = vmatpush1.bf16.msra.mxu0 0
  %506 = vmatprep.subr.bf16.mxu0 0
  %507 = vmatpush1.bf16.msra.mxu0 %v404
  %508 = vmatprep.subr.bf16.mxu0 0
  %509 = vmatpush2.bf16.msra.mxu0 0
  %510 = vmatprep.subr.bf16.mxu0 0
  %511 = vmatpush2.bf16.msra.mxu0 0
  %512 = vmatprep.subr.bf16.mxu0 0
  %513 = vmatpush2.bf16.msra.mxu0 0
  %514 = vmatprep.subr.bf16.mxu0 0
  %515 = vmatpush2.bf16.msra.mxu0 0
  %516 = vmatprep.subr.bf16.mxu0 0
  %517 = vmatpush2.bf16.msra.mxu0 0
  %518 = vmatprep.subr.bf16.mxu0 0
  %519 = vmatpush2.bf16.msra.mxu0 0
  %520 = vmatprep.subr.bf16.mxu0 0
  %521 = vmatpush2.bf16.msra.mxu0 0
  %522 = vmatprep.subr.bf16.mxu0 0
  %523 = vmatpush2.bf16.msra.mxu0 0
  %524 = vmatprep.mubr.bf16.mxu0 0
  %525 = vmatmul.mubr.bf16.gmra.mxu0 %v447
  %v526 = vpop.f32.mrf.mxu0
  %v527 = vadd.f32 0.0, %v526
  %v528 = vpop.f32.mrf.mxu0
  %v529 = vpop.f32.mrf.mxu0
  %v530 = vpop.f32.mrf.mxu0
  %531 = vdwg.mxu0
  %v532 = vsub.f32 %v441, %v487
  %533 = vmatprep.subr.bf16.mxu0 0
  %534 = vmatpush1.bf16.msra.mxu0 0
  %535 = vmatprep.subr.bf16.mxu0 0
  %536 = vmatpush1.bf16.msra.mxu0 0
  %537 = vmatprep.subr.bf16.mxu0 0
  %538 = vmatpush1.bf16.msra.mxu0 0
  %539 = vmatprep.subr.bf16.mxu0 0
  %540 = vmatpush1.bf16.msra.mxu0 0
  %541 = vmatprep.subr.bf16.mxu0 0
  %542 = vmatpush1.bf16.msra.mxu0 0
  %543 = vmatprep.subr.bf16.mxu0 0
  %544 = vmatpush1.bf16.msra.mxu0 0
  %545 = vmatprep.subr.bf16.mxu0 0
  %546 = vmatpush1.bf16.msra.mxu0 0
  %547 = vmatprep.subr.bf16.mxu0 0
  %548 = vmatpush1.bf16.msra.mxu0 %v450
  %549 = vmatprep.subr.bf16.mxu0 0
  %550 = vmatpush2.bf16.msra.mxu0 0
  %551 = vmatprep.subr.bf16.mxu0 0
  %552 = vmatpush2.bf16.msra.mxu0 0
  %553 = vmatprep.subr.bf16.mxu0 0
  %554 = vmatpush2.bf16.msra.mxu0 0
  %555 = vmatprep.subr.bf16.mxu0 0
  %556 = vmatpush2.bf16.msra.mxu0 0
  %557 = vmatprep.subr.bf16.mxu0 0
  %558 = vmatpush2.bf16.msra.mxu0 0
  %559 = vmatprep.subr.bf16.mxu0 0
  %560 = vmatpush2.bf16.msra.mxu0 0
  %561 = vmatprep.subr.bf16.mxu0 0
  %562 = vmatpush2.bf16.msra.mxu0 0
  %563 = vmatprep.subr.bf16.mxu0 0
  %564 = vmatpush2.bf16.msra.mxu0 0
  %565 = vmatprep.mubr.bf16.mxu0 0
  %566 = vmatmul.mubr.bf16.gmra.mxu0 %v401
  %v567 = vpop.f32.mrf.mxu0
  %v568 = vadd.f32 %v527, %v567
  %v569 = vpop.f32.mrf.mxu0
  %v570 = vpop.f32.mrf.mxu0
  %v571 = vpop.f32.mrf.mxu0
  %572 = vdwg.mxu0
  %574 = vrot.lane.b32.xlu0 %v568, 4
  %v575 = vpop.permute.xlu0 %574
  %v577 = vsel %vm22, %v532, %v575
  %s578 = scalar_lea.vmem %s4, 4
  %579 = vst.msk [vmem:[%s578] sm:$0x3] %vm202, %v577
  %s580 = scalar_lea.vmem %s0, 3
  %v581 = vld [vmem:[%s580] sm:$0x1]
  %s582 = scalar_lea.vmem %s1, 3
  %v583 = vld [vmem:[%s582] sm:$0x1]
  %s584 = scalar_lea.vmem %s2, 6
  %v585 = vld [vmem:[%s584] sm:$0x3]
  %s586 = scalar_lea.vmem %s3, 6
  %v587 = vld [vmem:[%s586] sm:$0x3]
  %v589 = vsel %vm22, %v581, 0
  %v592 = vsel %vm26, %v585, 0
  %594 = vmatprep.subr.bf16.mxu0 0
  %595 = vmatpush1.bf16.msra.mxu0 0
  %596 = vmatprep.subr.bf16.mxu0 0
  %597 = vmatpush1.bf16.msra.mxu0 0
  %598 = vmatprep.subr.bf16.mxu0 0
  %599 = vmatpush1.bf16.msra.mxu0 0
  %600 = vmatprep.subr.bf16.mxu0 0
  %601 = vmatpush1.bf16.msra.mxu0 0
  %602 = vmatprep.subr.bf16.mxu0 0
  %603 = vmatpush1.bf16.msra.mxu0 0
  %604 = vmatprep.subr.bf16.mxu0 0
  %605 = vmatpush1.bf16.msra.mxu0 0
  %606 = vmatprep.subr.bf16.mxu0 0
  %607 = vmatpush1.bf16.msra.mxu0 0
  %608 = vmatprep.subr.bf16.mxu0 0
  %609 = vmatpush1.bf16.msra.mxu0 %v592
  %610 = vmatprep.subr.bf16.mxu0 0
  %611 = vmatpush2.bf16.msra.mxu0 0
  %612 = vmatprep.subr.bf16.mxu0 0
  %613 = vmatpush2.bf16.msra.mxu0 0
  %614 = vmatprep.subr.bf16.mxu0 0
  %615 = vmatpush2.bf16.msra.mxu0 0
  %616 = vmatprep.subr.bf16.mxu0 0
  %617 = vmatpush2.bf16.msra.mxu0 0
  %618 = vmatprep.subr.bf16.mxu0 0
  %619 = vmatpush2.bf16.msra.mxu0 0
  %620 = vmatprep.subr.bf16.mxu0 0
  %621 = vmatpush2.bf16.msra.mxu0 0
  %622 = vmatprep.subr.bf16.mxu0 0
  %623 = vmatpush2.bf16.msra.mxu0 0
  %624 = vmatprep.subr.bf16.mxu0 0
  %625 = vmatpush2.bf16.msra.mxu0 0
  %626 = vmatprep.mubr.bf16.mxu0 0
  %627 = vmatmul.mubr.bf16.gmra.mxu0 %v589
  %v628 = vpop.f32.mrf.mxu0
  %v629 = vadd.f32 0.0, %v628
  %v630 = vpop.f32.mrf.mxu0
  %v631 = vpop.f32.mrf.mxu0
  %v632 = vpop.f32.mrf.mxu0
  %633 = vdwg.mxu0
  %v635 = vsel %vm22, %v583, 0
  %v638 = vsel %vm26, %v587, 0
  %640 = vmatprep.subr.bf16.mxu0 0
  %641 = vmatpush1.bf16.msra.mxu0 0
  %642 = vmatprep.subr.bf16.mxu0 0
  %643 = vmatpush1.bf16.msra.mxu0 0
  %644 = vmatprep.subr.bf16.mxu0 0
  %645 = vmatpush1.bf16.msra.mxu0 0
  %646 = vmatprep.subr.bf16.mxu0 0
  %647 = vmatpush1.bf16.msra.mxu0 0
  %648 = vmatprep.subr.bf16.mxu0 0
  %649 = vmatpush1.bf16.msra.mxu0 0
  %650 = vmatprep.subr.bf16.mxu0 0
  %651 = vmatpush1.bf16.msra.mxu0 0
  %652 = vmatprep.subr.bf16.mxu0 0
  %653 = vmatpush1.bf16.msra.mxu0 0
  %654 = vmatprep.subr.bf16.mxu0 0
  %655 = vmatpush1.bf16.msra.mxu0 %v638
  %656 = vmatprep.subr.bf16.mxu0 0
  %657 = vmatpush2.bf16.msra.mxu0 0
  %658 = vmatprep.subr.bf16.mxu0 0
  %659 = vmatpush2.bf16.msra.mxu0 0
  %660 = vmatprep.subr.bf16.mxu0 0
  %661 = vmatpush2.bf16.msra.mxu0 0
  %662 = vmatprep.subr.bf16.mxu0 0
  %663 = vmatpush2.bf16.msra.mxu0 0
  %664 = vmatprep.subr.bf16.mxu0 0
  %665 = vmatpush2.bf16.msra.mxu0 0
  %666 = vmatprep.subr.bf16.mxu0 0
  %667 = vmatpush2.bf16.msra.mxu0 0
  %668 = vmatprep.subr.bf16.mxu0 0
  %669 = vmatpush2.bf16.msra.mxu0 0
  %670 = vmatprep.subr.bf16.mxu0 0
  %671 = vmatpush2.bf16.msra.mxu0 0
  %672 = vmatprep.mubr.bf16.mxu0 0
  %673 = vmatmul.mubr.bf16.gmra.mxu0 %v635
  %v674 = vpop.f32.mrf.mxu0
  %v675 = vadd.f32 0.0, %v674
  %v676 = vpop.f32.mrf.mxu0
  %v677 = vpop.f32.mrf.mxu0
  %v678 = vpop.f32.mrf.mxu0
  %679 = vdwg.mxu0
  %680 = vmatprep.subr.bf16.mxu0 0
  %681 = vmatpush1.bf16.msra.mxu0 0
  %682 = vmatprep.subr.bf16.mxu0 0
  %683 = vmatpush1.bf16.msra.mxu0 0
  %684 = vmatprep.subr.bf16.mxu0 0
  %685 = vmatpush1.bf16.msra.mxu0 0
  %686 = vmatprep.subr.bf16.mxu0 0
  %687 = vmatpush1.bf16.msra.mxu0 0
  %688 = vmatprep.subr.bf16.mxu0 0
  %689 = vmatpush1.bf16.msra.mxu0 0
  %690 = vmatprep.subr.bf16.mxu0 0
  %691 = vmatpush1.bf16.msra.mxu0 0
  %692 = vmatprep.subr.bf16.mxu0 0
  %693 = vmatpush1.bf16.msra.mxu0 0
  %694 = vmatprep.subr.bf16.mxu0 0
  %695 = vmatpush1.bf16.msra.mxu0 %v592
  %696 = vmatprep.subr.bf16.mxu0 0
  %697 = vmatpush2.bf16.msra.mxu0 0
  %698 = vmatprep.subr.bf16.mxu0 0
  %699 = vmatpush2.bf16.msra.mxu0 0
  %700 = vmatprep.subr.bf16.mxu0 0
  %701 = vmatpush2.bf16.msra.mxu0 0
  %702 = vmatprep.subr.bf16.mxu0 0
  %703 = vmatpush2.bf16.msra.mxu0 0
  %704 = vmatprep.subr.bf16.mxu0 0
  %705 = vmatpush2.bf16.msra.mxu0 0
  %706 = vmatprep.subr.bf16.mxu0 0
  %707 = vmatpush2.bf16.msra.mxu0 0
  %708 = vmatprep.subr.bf16.mxu0 0
  %709 = vmatpush2.bf16.msra.mxu0 0
  %710 = vmatprep.subr.bf16.mxu0 0
  %711 = vmatpush2.bf16.msra.mxu0 0
  %712 = vmatprep.mubr.bf16.mxu0 0
  %713 = vmatmul.mubr.bf16.gmra.mxu0 %v635
  %v714 = vpop.f32.mrf.mxu0
  %v715 = vadd.f32 0.0, %v714
  %v716 = vpop.f32.mrf.mxu0
  %v717 = vpop.f32.mrf.mxu0
  %v718 = vpop.f32.mrf.mxu0
  %719 = vdwg.mxu0
  %v720 = vsub.f32 %v629, %v675
  %721 = vmatprep.subr.bf16.mxu0 0
  %722 = vmatpush1.bf16.msra.mxu0 0
  %723 = vmatprep.subr.bf16.mxu0 0
  %724 = vmatpush1.bf16.msra.mxu0 0
  %725 = vmatprep.subr.bf16.mxu0 0
  %726 = vmatpush1.bf16.msra.mxu0 0
  %727 = vmatprep.subr.bf16.mxu0 0
  %728 = vmatpush1.bf16.msra.mxu0 0
  %729 = vmatprep.subr.bf16.mxu0 0
  %730 = vmatpush1.bf16.msra.mxu0 0
  %731 = vmatprep.subr.bf16.mxu0 0
  %732 = vmatpush1.bf16.msra.mxu0 0
  %733 = vmatprep.subr.bf16.mxu0 0
  %734 = vmatpush1.bf16.msra.mxu0 0
  %735 = vmatprep.subr.bf16.mxu0 0
  %736 = vmatpush1.bf16.msra.mxu0 %v638
  %737 = vmatprep.subr.bf16.mxu0 0
  %738 = vmatpush2.bf16.msra.mxu0 0
  %739 = vmatprep.subr.bf16.mxu0 0
  %740 = vmatpush2.bf16.msra.mxu0 0
  %741 = vmatprep.subr.bf16.mxu0 0
  %742 = vmatpush2.bf16.msra.mxu0 0
  %743 = vmatprep.subr.bf16.mxu0 0
  %744 = vmatpush2.bf16.msra.mxu0 0
  %745 = vmatprep.subr.bf16.mxu0 0
  %746 = vmatpush2.bf16.msra.mxu0 0
  %747 = vmatprep.subr.bf16.mxu0 0
  %748 = vmatpush2.bf16.msra.mxu0 0
  %749 = vmatprep.subr.bf16.mxu0 0
  %750 = vmatpush2.bf16.msra.mxu0 0
  %751 = vmatprep.subr.bf16.mxu0 0
  %752 = vmatpush2.bf16.msra.mxu0 0
  %753 = vmatprep.mubr.bf16.mxu0 0
  %754 = vmatmul.mubr.bf16.gmra.mxu0 %v589
  %v755 = vpop.f32.mrf.mxu0
  %v756 = vadd.f32 %v715, %v755
  %v757 = vpop.f32.mrf.mxu0
  %v758 = vpop.f32.mrf.mxu0
  %v759 = vpop.f32.mrf.mxu0
  %760 = vdwg.mxu0
  %762 = vrot.lane.b32.xlu0 %v756, 4
  %v763 = vpop.permute.xlu0 %762
  %v765 = vsel %vm22, %v720, %v763
  %s766 = scalar_lea.vmem %s4, 6
  %767 = vst.msk [vmem:[%s766] sm:$0x3] %vm202, %v765
  %s768 = scalar_lea.vmem %s0, 4
  %v769 = vld [vmem:[%s768] sm:$0x1]
  %s770 = scalar_lea.vmem %s1, 4
  %v771 = vld [vmem:[%s770] sm:$0x1]
  %s772 = scalar_lea.vmem %s2, 8
  %v773 = vld [vmem:[%s772] sm:$0x3]
  %s774 = scalar_lea.vmem %s3, 8
  %v775 = vld [vmem:[%s774] sm:$0x3]
  %v777 = vsel %vm22, %v769, 0
  %v780 = vsel %vm26, %v773, 0
  %782 = vmatprep.subr.bf16.mxu0 0
  %783 = vmatpush1.bf16.msra.mxu0 0
  %784 = vmatprep.subr.bf16.mxu0 0
  %785 = vmatpush1.bf16.msra.mxu0 0
  %786 = vmatprep.subr.bf16.mxu0 0
  %787 = vmatpush1.bf16.msra.mxu0 0
  %788 = vmatprep.subr.bf16.mxu0 0
  %789 = vmatpush1.bf16.msra.mxu0 0
  %790 = vmatprep.subr.bf16.mxu0 0
  %791 = vmatpush1.bf16.msra.mxu0 0
  %792 = vmatprep.subr.bf16.mxu0 0
  %793 = vmatpush1.bf16.msra.mxu0 0
  %794 = vmatprep.subr.bf16.mxu0 0
  %795 = vmatpush1.bf16.msra.mxu0 0
  %796 = vmatprep.subr.bf16.mxu0 0
  %797 = vmatpush1.bf16.msra.mxu0 %v780
  %798 = vmatprep.subr.bf16.mxu0 0
  %799 = vmatpush2.bf16.msra.mxu0 0
  %800 = vmatprep.subr.bf16.mxu0 0
  %801 = vmatpush2.bf16.msra.mxu0 0
  %802 = vmatprep.subr.bf16.mxu0 0
  %803 = vmatpush2.bf16.msra.mxu0 0
  %804 = vmatprep.subr.bf16.mxu0 0
  %805 = vmatpush2.bf16.msra.mxu0 0
  %806 = vmatprep.subr.bf16.mxu0 0
  %807 = vmatpush2.bf16.msra.mxu0 0
  %808 = vmatprep.subr.bf16.mxu0 0
  %809 = vmatpush2.bf16.msra.mxu0 0
  %810 = vmatprep.subr.bf16.mxu0 0
  %811 = vmatpush2.bf16.msra.mxu0 0
  %812 = vmatprep.subr.bf16.mxu0 0
  %813 = vmatpush2.bf16.msra.mxu0 0
  %814 = vmatprep.mubr.bf16.mxu0 0
  %815 = vmatmul.mubr.bf16.gmra.mxu0 %v777
  %v816 = vpop.f32.mrf.mxu0
  %v817 = vadd.f32 0.0, %v816
  %v818 = vpop.f32.mrf.mxu0
  %v819 = vpop.f32.mrf.mxu0
  %v820 = vpop.f32.mrf.mxu0
  %821 = vdwg.mxu0
  %v823 = vsel %vm22, %v771, 0
  %v826 = vsel %vm26, %v775, 0
  %828 = vmatprep.subr.bf16.mxu0 0
  %829 = vmatpush1.bf16.msra.mxu0 0
  %830 = vmatprep.subr.bf16.mxu0 0
  %831 = vmatpush1.bf16.msra.mxu0 0
  %832 = vmatprep.subr.bf16.mxu0 0
  %833 = vmatpush1.bf16.msra.mxu0 0
  %834 = vmatprep.subr.bf16.mxu0 0
  %835 = vmatpush1.bf16.msra.mxu0 0
  %836 = vmatprep.subr.bf16.mxu0 0
  %837 = vmatpush1.bf16.msra.mxu0 0
  %838 = vmatprep.subr.bf16.mxu0 0
  %839 = vmatpush1.bf16.msra.mxu0 0
  %840 = vmatprep.subr.bf16.mxu0 0
  %841 = vmatpush1.bf16.msra.mxu0 0
  %842 = vmatprep.subr.bf16.mxu0 0
  %843 = vmatpush1.bf16.msra.mxu0 %v826
  %844 = vmatprep.subr.bf16.mxu0 0
  %845 = vmatpush2.bf16.msra.mxu0 0
  %846 = vmatprep.subr.bf16.mxu0 0
  %847 = vmatpush2.bf16.msra.mxu0 0
  %848 = vmatprep.subr.bf16.mxu0 0
  %849 = vmatpush2.bf16.msra.mxu0 0
  %850 = vmatprep.subr.bf16.mxu0 0
  %851 = vmatpush2.bf16.msra.mxu0 0
  %852 = vmatprep.subr.bf16.mxu0 0
  %853 = vmatpush2.bf16.msra.mxu0 0
  %854 = vmatprep.subr.bf16.mxu0 0
  %855 = vmatpush2.bf16.msra.mxu0 0
  %856 = vmatprep.subr.bf16.mxu0 0
  %857 = vmatpush2.bf16.msra.mxu0 0
  %858 = vmatprep.subr.bf16.mxu0 0
  %859 = vmatpush2.bf16.msra.mxu0 0
  %860 = vmatprep.mubr.bf16.mxu0 0
  %861 = vmatmul.mubr.bf16.gmra.mxu0 %v823
  %v862 = vpop.f32.mrf.mxu0
  %v863 = vadd.f32 0.0, %v862
  %v864 = vpop.f32.mrf.mxu0
  %v865 = vpop.f32.mrf.mxu0
  %v866 = vpop.f32.mrf.mxu0
  %867 = vdwg.mxu0
  %868 = vmatprep.subr.bf16.mxu0 0
  %869 = vmatpush1.bf16.msra.mxu0 0
  %870 = vmatprep.subr.bf16.mxu0 0
  %871 = vmatpush1.bf16.msra.mxu0 0
  %872 = vmatprep.subr.bf16.mxu0 0
  %873 = vmatpush1.bf16.msra.mxu0 0
  %874 = vmatprep.subr.bf16.mxu0 0
  %875 = vmatpush1.bf16.msra.mxu0 0
  %876 = vmatprep.subr.bf16.mxu0 0
  %877 = vmatpush1.bf16.msra.mxu0 0
  %878 = vmatprep.subr.bf16.mxu0 0
  %879 = vmatpush1.bf16.msra.mxu0 0
  %880 = vmatprep.subr.bf16.mxu0 0
  %881 = vmatpush1.bf16.msra.mxu0 0
  %882 = vmatprep.subr.bf16.mxu0 0
  %883 = vmatpush1.bf16.msra.mxu0 %v780
  %884 = vmatprep.subr.bf16.mxu0 0
  %885 = vmatpush2.bf16.msra.mxu0 0
  %886 = vmatprep.subr.bf16.mxu0 0
  %887 = vmatpush2.bf16.msra.mxu0 0
  %888 = vmatprep.subr.bf16.mxu0 0
  %889 = vmatpush2.bf16.msra.mxu0 0
  %890 = vmatprep.subr.bf16.mxu0 0
  %891 = vmatpush2.bf16.msra.mxu0 0
  %892 = vmatprep.subr.bf16.mxu0 0
  %893 = vmatpush2.bf16.msra.mxu0 0
  %894 = vmatprep.subr.bf16.mxu0 0
  %895 = vmatpush2.bf16.msra.mxu0 0
  %896 = vmatprep.subr.bf16.mxu0 0
  %897 = vmatpush2.bf16.msra.mxu0 0
  %898 = vmatprep.subr.bf16.mxu0 0
  %899 = vmatpush2.bf16.msra.mxu0 0
  %900 = vmatprep.mubr.bf16.mxu0 0
  %901 = vmatmul.mubr.bf16.gmra.mxu0 %v823
  %v902 = vpop.f32.mrf.mxu0
  %v903 = vadd.f32 0.0, %v902
  %v904 = vpop.f32.mrf.mxu0
  %v905 = vpop.f32.mrf.mxu0
  %v906 = vpop.f32.mrf.mxu0
  %907 = vdwg.mxu0
  %v908 = vsub.f32 %v817, %v863
  %909 = vmatprep.subr.bf16.mxu0 0
  %910 = vmatpush1.bf16.msra.mxu0 0
  %911 = vmatprep.subr.bf16.mxu0 0
  %912 = vmatpush1.bf16.msra.mxu0 0
  %913 = vmatprep.subr.bf16.mxu0 0
  %914 = vmatpush1.bf16.msra.mxu0 0
  %915 = vmatprep.subr.bf16.mxu0 0
  %916 = vmatpush1.bf16.msra.mxu0 0
  %917 = vmatprep.subr.bf16.mxu0 0
  %918 = vmatpush1.bf16.msra.mxu0 0
  %919 = vmatprep.subr.bf16.mxu0 0
  %920 = vmatpush1.bf16.msra.mxu0 0
  %921 = vmatprep.subr.bf16.mxu0 0
  %922 = vmatpush1.bf16.msra.mxu0 0
  %923 = vmatprep.subr.bf16.mxu0 0
  %924 = vmatpush1.bf16.msra.mxu0 %v826
  %925 = vmatprep.subr.bf16.mxu0 0
  %926 = vmatpush2.bf16.msra.mxu0 0
  %927 = vmatprep.subr.bf16.mxu0 0
  %928 = vmatpush2.bf16.msra.mxu0 0
  %929 = vmatprep.subr.bf16.mxu0 0
  %930 = vmatpush2.bf16.msra.mxu0 0
  %931 = vmatprep.subr.bf16.mxu0 0
  %932 = vmatpush2.bf16.msra.mxu0 0
  %933 = vmatprep.subr.bf16.mxu0 0
  %934 = vmatpush2.bf16.msra.mxu0 0
  %935 = vmatprep.subr.bf16.mxu0 0
  %936 = vmatpush2.bf16.msra.mxu0 0
  %937 = vmatprep.subr.bf16.mxu0 0
  %938 = vmatpush2.bf16.msra.mxu0 0
  %939 = vmatprep.subr.bf16.mxu0 0
  %940 = vmatpush2.bf16.msra.mxu0 0
  %941 = vmatprep.mubr.bf16.mxu0 0
  %942 = vmatmul.mubr.bf16.gmra.mxu0 %v777
  %v943 = vpop.f32.mrf.mxu0
  %v944 = vadd.f32 %v903, %v943
  %v945 = vpop.f32.mrf.mxu0
  %v946 = vpop.f32.mrf.mxu0
  %v947 = vpop.f32.mrf.mxu0
  %948 = vdwg.mxu0
  %950 = vrot.lane.b32.xlu0 %v944, 4
  %v951 = vpop.permute.xlu0 %950
  %v953 = vsel %vm22, %v908, %v951
  %s954 = scalar_lea.vmem %s4, 8
  %955 = vst.msk [vmem:[%s954] sm:$0x3] %vm202, %v953
  %s956 = scalar_lea.vmem %s0, 5
  %v957 = vld [vmem:[%s956] sm:$0x1]
  %s958 = scalar_lea.vmem %s1, 5
  %v959 = vld [vmem:[%s958] sm:$0x1]
  %s960 = scalar_lea.vmem %s2, 10
  %v961 = vld [vmem:[%s960] sm:$0x3]
  %s962 = scalar_lea.vmem %s3, 10
  %v963 = vld [vmem:[%s962] sm:$0x3]
  %v965 = vsel %vm22, %v957, 0
  %v968 = vsel %vm26, %v961, 0
  %970 = vmatprep.subr.bf16.mxu0 0
  %971 = vmatpush1.bf16.msra.mxu0 0
  %972 = vmatprep.subr.bf16.mxu0 0
  %973 = vmatpush1.bf16.msra.mxu0 0
  %974 = vmatprep.subr.bf16.mxu0 0
  %975 = vmatpush1.bf16.msra.mxu0 0
  %976 = vmatprep.subr.bf16.mxu0 0
  %977 = vmatpush1.bf16.msra.mxu0 0
  %978 = vmatprep.subr.bf16.mxu0 0
  %979 = vmatpush1.bf16.msra.mxu0 0
  %980 = vmatprep.subr.bf16.mxu0 0
  %981 = vmatpush1.bf16.msra.mxu0 0
  %982 = vmatprep.subr.bf16.mxu0 0
  %983 = vmatpush1.bf16.msra.mxu0 0
  %984 = vmatprep.subr.bf16.mxu0 0
  %985 = vmatpush1.bf16.msra.mxu0 %v968
  %986 = vmatprep.subr.bf16.mxu0 0
  %987 = vmatpush2.bf16.msra.mxu0 0
  %988 = vmatprep.subr.bf16.mxu0 0
  %989 = vmatpush2.bf16.msra.mxu0 0
  %990 = vmatprep.subr.bf16.mxu0 0
  %991 = vmatpush2.bf16.msra.mxu0 0
  %992 = vmatprep.subr.bf16.mxu0 0
  %993 = vmatpush2.bf16.msra.mxu0 0
  %994 = vmatprep.subr.bf16.mxu0 0
  %995 = vmatpush2.bf16.msra.mxu0 0
  %996 = vmatprep.subr.bf16.mxu0 0
  %997 = vmatpush2.bf16.msra.mxu0 0
  %998 = vmatprep.subr.bf16.mxu0 0
  %999 = vmatpush2.bf16.msra.mxu0 0
  %1000 = vmatprep.subr.bf16.mxu0 0
  %1001 = vmatpush2.bf16.msra.mxu0 0
  %1002 = vmatprep.mubr.bf16.mxu0 0
  %1003 = vmatmul.mubr.bf16.gmra.mxu0 %v965
  %v1004 = vpop.f32.mrf.mxu0
  %v1005 = vadd.f32 0.0, %v1004
  %v1006 = vpop.f32.mrf.mxu0
  %v1007 = vpop.f32.mrf.mxu0
  %v1008 = vpop.f32.mrf.mxu0
  %1009 = vdwg.mxu0
  %v1011 = vsel %vm22, %v959, 0
  %v1014 = vsel %vm26, %v963, 0
  %1016 = vmatprep.subr.bf16.mxu0 0
  %1017 = vmatpush1.bf16.msra.mxu0 0
  %1018 = vmatprep.subr.bf16.mxu0 0
  %1019 = vmatpush1.bf16.msra.mxu0 0
  %1020 = vmatprep.subr.bf16.mxu0 0
  %1021 = vmatpush1.bf16.msra.mxu0 0
  %1022 = vmatprep.subr.bf16.mxu0 0
  %1023 = vmatpush1.bf16.msra.mxu0 0
  %1024 = vmatprep.subr.bf16.mxu0 0
  %1025 = vmatpush1.bf16.msra.mxu0 0
  %1026 = vmatprep.subr.bf16.mxu0 0
  %1027 = vmatpush1.bf16.msra.mxu0 0
  %1028 = vmatprep.subr.bf16.mxu0 0
  %1029 = vmatpush1.bf16.msra.mxu0 0
  %1030 = vmatprep.subr.bf16.mxu0 0
  %1031 = vmatpush1.bf16.msra.mxu0 %v1014
  %1032 = vmatprep.subr.bf16.mxu0 0
  %1033 = vmatpush2.bf16.msra.mxu0 0
  %1034 = vmatprep.subr.bf16.mxu0 0
  %1035 = vmatpush2.bf16.msra.mxu0 0
  %1036 = vmatprep.subr.bf16.mxu0 0
  %1037 = vmatpush2.bf16.msra.mxu0 0
  %1038 = vmatprep.subr.bf16.mxu0 0
  %1039 = vmatpush2.bf16.msra.mxu0 0
  %1040 = vmatprep.subr.bf16.mxu0 0
  %1041 = vmatpush2.bf16.msra.mxu0 0
  %1042 = vmatprep.subr.bf16.mxu0 0
  %1043 = vmatpush2.bf16.msra.mxu0 0
  %1044 = vmatprep.subr.bf16.mxu0 0
  %1045 = vmatpush2.bf16.msra.mxu0 0
  %1046 = vmatprep.subr.bf16.mxu0 0
  %1047 = vmatpush2.bf16.msra.mxu0 0
  %1048 = vmatprep.mubr.bf16.mxu0 0
  %1049 = vmatmul.mubr.bf16.gmra.mxu0 %v1011
  %v1050 = vpop.f32.mrf.mxu0
  %v1051 = vadd.f32 0.0, %v1050
  %v1052 = vpop.f32.mrf.mxu0
  %v1053 = vpop.f32.mrf.mxu0
  %v1054 = vpop.f32.mrf.mxu0
  %1055 = vdwg.mxu0
  %1056 = vmatprep.subr.bf16.mxu0 0
  %1057 = vmatpush1.bf16.msra.mxu0 0
  %1058 = vmatprep.subr.bf16.mxu0 0
  %1059 = vmatpush1.bf16.msra.mxu0 0
  %1060 = vmatprep.subr.bf16.mxu0 0
  %1061 = vmatpush1.bf16.msra.mxu0 0
  %1062 = vmatprep.subr.bf16.mxu0 0
  %1063 = vmatpush1.bf16.msra.mxu0 0
  %1064 = vmatprep.subr.bf16.mxu0 0
  %1065 = vmatpush1.bf16.msra.mxu0 0
  %1066 = vmatprep.subr.bf16.mxu0 0
  %1067 = vmatpush1.bf16.msra.mxu0 0
  %1068 = vmatprep.subr.bf16.mxu0 0
  %1069 = vmatpush1.bf16.msra.mxu0 0
  %1070 = vmatprep.subr.bf16.mxu0 0
  %1071 = vmatpush1.bf16.msra.mxu0 %v968
  %1072 = vmatprep.subr.bf16.mxu0 0
  %1073 = vmatpush2.bf16.msra.mxu0 0
  %1074 = vmatprep.subr.bf16.mxu0 0
  %1075 = vmatpush2.bf16.msra.mxu0 0
  %1076 = vmatprep.subr.bf16.mxu0 0
  %1077 = vmatpush2.bf16.msra.mxu0 0
  %1078 = vmatprep.subr.bf16.mxu0 0
  %1079 = vmatpush2.bf16.msra.mxu0 0
  %1080 = vmatprep.subr.bf16.mxu0 0
  %1081 = vmatpush2.bf16.msra.mxu0 0
  %1082 = vmatprep.subr.bf16.mxu0 0
  %1083 = vmatpush2.bf16.msra.mxu0 0
  %1084 = vmatprep.subr.bf16.mxu0 0
  %1085 = vmatpush2.bf16.msra.mxu0 0
  %1086 = vmatprep.subr.bf16.mxu0 0
  %1087 = vmatpush2.bf16.msra.mxu0 0
  %1088 = vmatprep.mubr.bf16.mxu0 0
  %1089 = vmatmul.mubr.bf16.gmra.mxu0 %v1011
  %v1090 = vpop.f32.mrf.mxu0
  %v1091 = vadd.f32 0.0, %v1090
  %v1092 = vpop.f32.mrf.mxu0
  %v1093 = vpop.f32.mrf.mxu0
  %v1094 = vpop.f32.mrf.mxu0
  %1095 = vdwg.mxu0
  %v1096 = vsub.f32 %v1005, %v1051
  %1097 = vmatprep.subr.bf16.mxu0 0
  %1098 = vmatpush1.bf16.msra.mxu0 0
  %1099 = vmatprep.subr.bf16.mxu0 0
  %1100 = vmatpush1.bf16.msra.mxu0 0
  %1101 = vmatprep.subr.bf16.mxu0 0
  %1102 = vmatpush1.bf16.msra.mxu0 0
  %1103 = vmatprep.subr.bf16.mxu0 0
  %1104 = vmatpush1.bf16.msra.mxu0 0
  %1105 = vmatprep.subr.bf16.mxu0 0
  %1106 = vmatpush1.bf16.msra.mxu0 0
  %1107 = vmatprep.subr.bf16.mxu0 0
  %1108 = vmatpush1.bf16.msra.mxu0 0
  %1109 = vmatprep.subr.bf16.mxu0 0
  %1110 = vmatpush1.bf16.msra.mxu0 0
  %1111 = vmatprep.subr.bf16.mxu0 0
  %1112 = vmatpush1.bf16.msra.mxu0 %v1014
  %1113 = vmatprep.subr.bf16.mxu0 0
  %1114 = vmatpush2.bf16.msra.mxu0 0
  %1115 = vmatprep.subr.bf16.mxu0 0
  %1116 = vmatpush2.bf16.msra.mxu0 0
  %1117 = vmatprep.subr.bf16.mxu0 0
  %1118 = vmatpush2.bf16.msra.mxu0 0
  %1119 = vmatprep.subr.bf16.mxu0 0
  %1120 = vmatpush2.bf16.msra.mxu0 0
  %1121 = vmatprep.subr.bf16.mxu0 0
  %1122 = vmatpush2.bf16.msra.mxu0 0
  %1123 = vmatprep.subr.bf16.mxu0 0
  %1124 = vmatpush2.bf16.msra.mxu0 0
  %1125 = vmatprep.subr.bf16.mxu0 0
  %1126 = vmatpush2.bf16.msra.mxu0 0
  %1127 = vmatprep.subr.bf16.mxu0 0
  %1128 = vmatpush2.bf16.msra.mxu0 0
  %1129 = vmatprep.mubr.bf16.mxu0 0
  %1130 = vmatmul.mubr.bf16.gmra.mxu0 %v965
  %v1131 = vpop.f32.mrf.mxu0
  %v1132 = vadd.f32 %v1091, %v1131
  %v1133 = vpop.f32.mrf.mxu0
  %v1134 = vpop.f32.mrf.mxu0
  %v1135 = vpop.f32.mrf.mxu0
  %1136 = vdwg.mxu0
  %1138 = vrot.lane.b32.xlu0 %v1132, 4
  %v1139 = vpop.permute.xlu0 %1138
  %v1141 = vsel %vm22, %v1096, %v1139
  %s1142 = scalar_lea.vmem %s4, 10
  %1143 = vst.msk [vmem:[%s1142] sm:$0x3] %vm202, %v1141
  %s1144 = scalar_lea.vmem %s0, 6
  %v1145 = vld [vmem:[%s1144] sm:$0x1]
  %s1146 = scalar_lea.vmem %s1, 6
  %v1147 = vld [vmem:[%s1146] sm:$0x1]
  %s1148 = scalar_lea.vmem %s2, 12
  %v1149 = vld [vmem:[%s1148] sm:$0x3]
  %s1150 = scalar_lea.vmem %s3, 12
  %v1151 = vld [vmem:[%s1150] sm:$0x3]
  %v1153 = vsel %vm22, %v1145, 0
  %v1156 = vsel %vm26, %v1149, 0
  %1158 = vmatprep.subr.bf16.mxu0 0
  %1159 = vmatpush1.bf16.msra.mxu0 0
  %1160 = vmatprep.subr.bf16.mxu0 0
  %1161 = vmatpush1.bf16.msra.mxu0 0
  %1162 = vmatprep.subr.bf16.mxu0 0
  %1163 = vmatpush1.bf16.msra.mxu0 0
  %1164 = vmatprep.subr.bf16.mxu0 0
  %1165 = vmatpush1.bf16.msra.mxu0 0
  %1166 = vmatprep.subr.bf16.mxu0 0
  %1167 = vmatpush1.bf16.msra.mxu0 0
  %1168 = vmatprep.subr.bf16.mxu0 0
  %1169 = vmatpush1.bf16.msra.mxu0 0
  %1170 = vmatprep.subr.bf16.mxu0 0
  %1171 = vmatpush1.bf16.msra.mxu0 0
  %1172 = vmatprep.subr.bf16.mxu0 0
  %1173 = vmatpush1.bf16.msra.mxu0 %v1156
  %1174 = vmatprep.subr.bf16.mxu0 0
  %1175 = vmatpush2.bf16.msra.mxu0 0
  %1176 = vmatprep.subr.bf16.mxu0 0
  %1177 = vmatpush2.bf16.msra.mxu0 0
  %1178 = vmatprep.subr.bf16.mxu0 0
  %1179 = vmatpush2.bf16.msra.mxu0 0
  %1180 = vmatprep.subr.bf16.mxu0 0
  %1181 = vmatpush2.bf16.msra.mxu0 0
  %1182 = vmatprep.subr.bf16.mxu0 0
  %1183 = vmatpush2.bf16.msra.mxu0 0
  %1184 = vmatprep.subr.bf16.mxu0 0
  %1185 = vmatpush2.bf16.msra.mxu0 0
  %1186 = vmatprep.subr.bf16.mxu0 0
  %1187 = vmatpush2.bf16.msra.mxu0 0
  %1188 = vmatprep.subr.bf16.mxu0 0
  %1189 = vmatpush2.bf16.msra.mxu0 0
  %1190 = vmatprep.mubr.bf16.mxu0 0
  %1191 = vmatmul.mubr.bf16.gmra.mxu0 %v1153
  %v1192 = vpop.f32.mrf.mxu0
  %v1193 = vadd.f32 0.0, %v1192
  %v1194 = vpop.f32.mrf.mxu0
  %v1195 = vpop.f32.mrf.mxu0
  %v1196 = vpop.f32.mrf.mxu0
  %1197 = vdwg.mxu0
  %v1199 = vsel %vm22, %v1147, 0
  %v1202 = vsel %vm26, %v1151, 0
  %1204 = vmatprep.subr.bf16.mxu0 0
  %1205 = vmatpush1.bf16.msra.mxu0 0
  %1206 = vmatprep.subr.bf16.mxu0 0
  %1207 = vmatpush1.bf16.msra.mxu0 0
  %1208 = vmatprep.subr.bf16.mxu0 0
  %1209 = vmatpush1.bf16.msra.mxu0 0
  %1210 = vmatprep.subr.bf16.mxu0 0
  %1211 = vmatpush1.bf16.msra.mxu0 0
  %1212 = vmatprep.subr.bf16.mxu0 0
  %1213 = vmatpush1.bf16.msra.mxu0 0
  %1214 = vmatprep.subr.bf16.mxu0 0
  %1215 = vmatpush1.bf16.msra.mxu0 0
  %1216 = vmatprep.subr.bf16.mxu0 0
  %1217 = vmatpush1.bf16.msra.mxu0 0
  %1218 = vmatprep.subr.bf16.mxu0 0
  %1219 = vmatpush1.bf16.msra.mxu0 %v1202
  %1220 = vmatprep.subr.bf16.mxu0 0
  %1221 = vmatpush2.bf16.msra.mxu0 0
  %1222 = vmatprep.subr.bf16.mxu0 0
  %1223 = vmatpush2.bf16.msra.mxu0 0
  %1224 = vmatprep.subr.bf16.mxu0 0
  %1225 = vmatpush2.bf16.msra.mxu0 0
  %1226 = vmatprep.subr.bf16.mxu0 0
  %1227 = vmatpush2.bf16.msra.mxu0 0
  %1228 = vmatprep.subr.bf16.mxu0 0
  %1229 = vmatpush2.bf16.msra.mxu0 0
  %1230 = vmatprep.subr.bf16.mxu0 0
  %1231 = vmatpush2.bf16.msra.mxu0 0
  %1232 = vmatprep.subr.bf16.mxu0 0
  %1233 = vmatpush2.bf16.msra.mxu0 0
  %1234 = vmatprep.subr.bf16.mxu0 0
  %1235 = vmatpush2.bf16.msra.mxu0 0
  %1236 = vmatprep.mubr.bf16.mxu0 0
  %1237 = vmatmul.mubr.bf16.gmra.mxu0 %v1199
  %v1238 = vpop.f32.mrf.mxu0
  %v1239 = vadd.f32 0.0, %v1238
  %v1240 = vpop.f32.mrf.mxu0
  %v1241 = vpop.f32.mrf.mxu0
  %v1242 = vpop.f32.mrf.mxu0
  %1243 = vdwg.mxu0
  %1244 = vmatprep.subr.bf16.mxu0 0
  %1245 = vmatpush1.bf16.msra.mxu0 0
  %1246 = vmatprep.subr.bf16.mxu0 0
  %1247 = vmatpush1.bf16.msra.mxu0 0
  %1248 = vmatprep.subr.bf16.mxu0 0
  %1249 = vmatpush1.bf16.msra.mxu0 0
  %1250 = vmatprep.subr.bf16.mxu0 0
  %1251 = vmatpush1.bf16.msra.mxu0 0
  %1252 = vmatprep.subr.bf16.mxu0 0
  %1253 = vmatpush1.bf16.msra.mxu0 0
  %1254 = vmatprep.subr.bf16.mxu0 0
  %1255 = vmatpush1.bf16.msra.mxu0 0
  %1256 = vmatprep.subr.bf16.mxu0 0
  %1257 = vmatpush1.bf16.msra.mxu0 0
  %1258 = vmatprep.subr.bf16.mxu0 0
  %1259 = vmatpush1.bf16.msra.mxu0 %v1156
  %1260 = vmatprep.subr.bf16.mxu0 0
  %1261 = vmatpush2.bf16.msra.mxu0 0
  %1262 = vmatprep.subr.bf16.mxu0 0
  %1263 = vmatpush2.bf16.msra.mxu0 0
  %1264 = vmatprep.subr.bf16.mxu0 0
  %1265 = vmatpush2.bf16.msra.mxu0 0
  %1266 = vmatprep.subr.bf16.mxu0 0
  %1267 = vmatpush2.bf16.msra.mxu0 0
  %1268 = vmatprep.subr.bf16.mxu0 0
  %1269 = vmatpush2.bf16.msra.mxu0 0
  %1270 = vmatprep.subr.bf16.mxu0 0
  %1271 = vmatpush2.bf16.msra.mxu0 0
  %1272 = vmatprep.subr.bf16.mxu0 0
  %1273 = vmatpush2.bf16.msra.mxu0 0
  %1274 = vmatprep.subr.bf16.mxu0 0
  %1275 = vmatpush2.bf16.msra.mxu0 0
  %1276 = vmatprep.mubr.bf16.mxu0 0
  %1277 = vmatmul.mubr.bf16.gmra.mxu0 %v1199
  %v1278 = vpop.f32.mrf.mxu0
  %v1279 = vadd.f32 0.0, %v1278
  %v1280 = vpop.f32.mrf.mxu0
  %v1281 = vpop.f32.mrf.mxu0
  %v1282 = vpop.f32.mrf.mxu0
  %1283 = vdwg.mxu0
  %v1284 = vsub.f32 %v1193, %v1239
  %1285 = vmatprep.subr.bf16.mxu0 0
  %1286 = vmatpush1.bf16.msra.mxu0 0
  %1287 = vmatprep.subr.bf16.mxu0 0
  %1288 = vmatpush1.bf16.msra.mxu0 0
  %1289 = vmatprep.subr.bf16.mxu0 0
  %1290 = vmatpush1.bf16.msra.mxu0 0
  %1291 = vmatprep.subr.bf16.mxu0 0
  %1292 = vmatpush1.bf16.msra.mxu0 0
  %1293 = vmatprep.subr.bf16.mxu0 0
  %1294 = vmatpush1.bf16.msra.mxu0 0
  %1295 = vmatprep.subr.bf16.mxu0 0
  %1296 = vmatpush1.bf16.msra.mxu0 0
  %1297 = vmatprep.subr.bf16.mxu0 0
  %1298 = vmatpush1.bf16.msra.mxu0 0
  %1299 = vmatprep.subr.bf16.mxu0 0
  %1300 = vmatpush1.bf16.msra.mxu0 %v1202
  %1301 = vmatprep.subr.bf16.mxu0 0
  %1302 = vmatpush2.bf16.msra.mxu0 0
  %1303 = vmatprep.subr.bf16.mxu0 0
  %1304 = vmatpush2.bf16.msra.mxu0 0
  %1305 = vmatprep.subr.bf16.mxu0 0
  %1306 = vmatpush2.bf16.msra.mxu0 0
  %1307 = vmatprep.subr.bf16.mxu0 0
  %1308 = vmatpush2.bf16.msra.mxu0 0
  %1309 = vmatprep.subr.bf16.mxu0 0
  %1310 = vmatpush2.bf16.msra.mxu0 0
  %1311 = vmatprep.subr.bf16.mxu0 0
  %1312 = vmatpush2.bf16.msra.mxu0 0
  %1313 = vmatprep.subr.bf16.mxu0 0
  %1314 = vmatpush2.bf16.msra.mxu0 0
  %1315 = vmatprep.subr.bf16.mxu0 0
  %1316 = vmatpush2.bf16.msra.mxu0 0
  %1317 = vmatprep.mubr.bf16.mxu0 0
  %1318 = vmatmul.mubr.bf16.gmra.mxu0 %v1153
  %v1319 = vpop.f32.mrf.mxu0
  %v1320 = vadd.f32 %v1279, %v1319
  %v1321 = vpop.f32.mrf.mxu0
  %v1322 = vpop.f32.mrf.mxu0
  %v1323 = vpop.f32.mrf.mxu0
  %1324 = vdwg.mxu0
  %1326 = vrot.lane.b32.xlu0 %v1320, 4
  %v1327 = vpop.permute.xlu0 %1326
  %v1329 = vsel %vm22, %v1284, %v1327
  %s1330 = scalar_lea.vmem %s4, 12
  %1331 = vst.msk [vmem:[%s1330] sm:$0x3] %vm202, %v1329
  %s1332 = scalar_lea.vmem %s0, 7
  %v1333 = vld [vmem:[%s1332] sm:$0x1]
  %s1334 = scalar_lea.vmem %s1, 7
  %v1335 = vld [vmem:[%s1334] sm:$0x1]
  %s1336 = scalar_lea.vmem %s2, 14
  %v1337 = vld [vmem:[%s1336] sm:$0x3]
  %s1338 = scalar_lea.vmem %s3, 14
  %v1339 = vld [vmem:[%s1338] sm:$0x3]
  %v1341 = vsel %vm22, %v1333, 0
  %v1344 = vsel %vm26, %v1337, 0
  %1346 = vmatprep.subr.bf16.mxu0 0
  %1347 = vmatpush1.bf16.msra.mxu0 0
  %1348 = vmatprep.subr.bf16.mxu0 0
  %1349 = vmatpush1.bf16.msra.mxu0 0
  %1350 = vmatprep.subr.bf16.mxu0 0
  %1351 = vmatpush1.bf16.msra.mxu0 0
  %1352 = vmatprep.subr.bf16.mxu0 0
  %1353 = vmatpush1.bf16.msra.mxu0 0
  %1354 = vmatprep.subr.bf16.mxu0 0
  %1355 = vmatpush1.bf16.msra.mxu0 0
  %1356 = vmatprep.subr.bf16.mxu0 0
  %1357 = vmatpush1.bf16.msra.mxu0 0
  %1358 = vmatprep.subr.bf16.mxu0 0
  %1359 = vmatpush1.bf16.msra.mxu0 0
  %1360 = vmatprep.subr.bf16.mxu0 0
  %1361 = vmatpush1.bf16.msra.mxu0 %v1344
  %1362 = vmatprep.subr.bf16.mxu0 0
  %1363 = vmatpush2.bf16.msra.mxu0 0
  %1364 = vmatprep.subr.bf16.mxu0 0
  %1365 = vmatpush2.bf16.msra.mxu0 0
  %1366 = vmatprep.subr.bf16.mxu0 0
  %1367 = vmatpush2.bf16.msra.mxu0 0
  %1368 = vmatprep.subr.bf16.mxu0 0
  %1369 = vmatpush2.bf16.msra.mxu0 0
  %1370 = vmatprep.subr.bf16.mxu0 0
  %1371 = vmatpush2.bf16.msra.mxu0 0
  %1372 = vmatprep.subr.bf16.mxu0 0
  %1373 = vmatpush2.bf16.msra.mxu0 0
  %1374 = vmatprep.subr.bf16.mxu0 0
  %1375 = vmatpush2.bf16.msra.mxu0 0
  %1376 = vmatprep.subr.bf16.mxu0 0
  %1377 = vmatpush2.bf16.msra.mxu0 0
  %1378 = vmatprep.mubr.bf16.mxu0 0
  %1379 = vmatmul.mubr.bf16.gmra.mxu0 %v1341
  %v1380 = vpop.f32.mrf.mxu0
  %v1381 = vadd.f32 0.0, %v1380
  %v1382 = vpop.f32.mrf.mxu0
  %v1383 = vpop.f32.mrf.mxu0
  %v1384 = vpop.f32.mrf.mxu0
  %1385 = vdwg.mxu0
  %v1387 = vsel %vm22, %v1335, 0
  %v1390 = vsel %vm26, %v1339, 0
  %1392 = vmatprep.subr.bf16.mxu0 0
  %1393 = vmatpush1.bf16.msra.mxu0 0
  %1394 = vmatprep.subr.bf16.mxu0 0
  %1395 = vmatpush1.bf16.msra.mxu0 0
  %1396 = vmatprep.subr.bf16.mxu0 0
  %1397 = vmatpush1.bf16.msra.mxu0 0
  %1398 = vmatprep.subr.bf16.mxu0 0
  %1399 = vmatpush1.bf16.msra.mxu0 0
  %1400 = vmatprep.subr.bf16.mxu0 0
  %1401 = vmatpush1.bf16.msra.mxu0 0
  %1402 = vmatprep.subr.bf16.mxu0 0
  %1403 = vmatpush1.bf16.msra.mxu0 0
  %1404 = vmatprep.subr.bf16.mxu0 0
  %1405 = vmatpush1.bf16.msra.mxu0 0
  %1406 = vmatprep.subr.bf16.mxu0 0
  %1407 = vmatpush1.bf16.msra.mxu0 %v1390
  %1408 = vmatprep.subr.bf16.mxu0 0
  %1409 = vmatpush2.bf16.msra.mxu0 0
  %1410 = vmatprep.subr.bf16.mxu0 0
  %1411 = vmatpush2.bf16.msra.mxu0 0
  %1412 = vmatprep.subr.bf16.mxu0 0
  %1413 = vmatpush2.bf16.msra.mxu0 0
  %1414 = vmatprep.subr.bf16.mxu0 0
  %1415 = vmatpush2.bf16.msra.mxu0 0
  %1416 = vmatprep.subr.bf16.mxu0 0
  %1417 = vmatpush2.bf16.msra.mxu0 0
  %1418 = vmatprep.subr.bf16.mxu0 0
  %1419 = vmatpush2.bf16.msra.mxu0 0
  %1420 = vmatprep.subr.bf16.mxu0 0
  %1421 = vmatpush2.bf16.msra.mxu0 0
  %1422 = vmatprep.subr.bf16.mxu0 0
  %1423 = vmatpush2.bf16.msra.mxu0 0
  %1424 = vmatprep.mubr.bf16.mxu0 0
  %1425 = vmatmul.mubr.bf16.gmra.mxu0 %v1387
  %v1426 = vpop.f32.mrf.mxu0
  %v1427 = vadd.f32 0.0, %v1426
  %v1428 = vpop.f32.mrf.mxu0
  %v1429 = vpop.f32.mrf.mxu0
  %v1430 = vpop.f32.mrf.mxu0
  %1431 = vdwg.mxu0
  %1432 = vmatprep.subr.bf16.mxu0 0
  %1433 = vmatpush1.bf16.msra.mxu0 0
  %1434 = vmatprep.subr.bf16.mxu0 0
  %1435 = vmatpush1.bf16.msra.mxu0 0
  %1436 = vmatprep.subr.bf16.mxu0 0
  %1437 = vmatpush1.bf16.msra.mxu0 0
  %1438 = vmatprep.subr.bf16.mxu0 0
  %1439 = vmatpush1.bf16.msra.mxu0 0
  %1440 = vmatprep.subr.bf16.mxu0 0
  %1441 = vmatpush1.bf16.msra.mxu0 0
  %1442 = vmatprep.subr.bf16.mxu0 0
  %1443 = vmatpush1.bf16.msra.mxu0 0
  %1444 = vmatprep.subr.bf16.mxu0 0
  %1445 = vmatpush1.bf16.msra.mxu0 0
  %1446 = vmatprep.subr.bf16.mxu0 0
  %1447 = vmatpush1.bf16.msra.mxu0 %v1344
  %1448 = vmatprep.subr.bf16.mxu0 0
  %1449 = vmatpush2.bf16.msra.mxu0 0
  %1450 = vmatprep.subr.bf16.mxu0 0
  %1451 = vmatpush2.bf16.msra.mxu0 0
  %1452 = vmatprep.subr.bf16.mxu0 0
  %1453 = vmatpush2.bf16.msra.mxu0 0
  %1454 = vmatprep.subr.bf16.mxu0 0
  %1455 = vmatpush2.bf16.msra.mxu0 0
  %1456 = vmatprep.subr.bf16.mxu0 0
  %1457 = vmatpush2.bf16.msra.mxu0 0
  %1458 = vmatprep.subr.bf16.mxu0 0
  %1459 = vmatpush2.bf16.msra.mxu0 0
  %1460 = vmatprep.subr.bf16.mxu0 0
  %1461 = vmatpush2.bf16.msra.mxu0 0
  %1462 = vmatprep.subr.bf16.mxu0 0
  %1463 = vmatpush2.bf16.msra.mxu0 0
  %1464 = vmatprep.mubr.bf16.mxu0 0
  %1465 = vmatmul.mubr.bf16.gmra.mxu0 %v1387
  %v1466 = vpop.f32.mrf.mxu0
  %v1467 = vadd.f32 0.0, %v1466
  %v1468 = vpop.f32.mrf.mxu0
  %v1469 = vpop.f32.mrf.mxu0
  %v1470 = vpop.f32.mrf.mxu0
  %1471 = vdwg.mxu0
  %v1472 = vsub.f32 %v1381, %v1427
  %1473 = vmatprep.subr.bf16.mxu0 0
  %1474 = vmatpush1.bf16.msra.mxu0 0
  %1475 = vmatprep.subr.bf16.mxu0 0
  %1476 = vmatpush1.bf16.msra.mxu0 0
  %1477 = vmatprep.subr.bf16.mxu0 0
  %1478 = vmatpush1.bf16.msra.mxu0 0
  %1479 = vmatprep.subr.bf16.mxu0 0
  %1480 = vmatpush1.bf16.msra.mxu0 0
  %1481 = vmatprep.subr.bf16.mxu0 0
  %1482 = vmatpush1.bf16.msra.mxu0 0
  %1483 = vmatprep.subr.bf16.mxu0 0
  %1484 = vmatpush1.bf16.msra.mxu0 0
  %1485 = vmatprep.subr.bf16.mxu0 0
  %1486 = vmatpush1.bf16.msra.mxu0 0
  %1487 = vmatprep.subr.bf16.mxu0 0
  %1488 = vmatpush1.bf16.msra.mxu0 %v1390
  %1489 = vmatprep.subr.bf16.mxu0 0
  %1490 = vmatpush2.bf16.msra.mxu0 0
  %1491 = vmatprep.subr.bf16.mxu0 0
  %1492 = vmatpush2.bf16.msra.mxu0 0
  %1493 = vmatprep.subr.bf16.mxu0 0
  %1494 = vmatpush2.bf16.msra.mxu0 0
  %1495 = vmatprep.subr.bf16.mxu0 0
  %1496 = vmatpush2.bf16.msra.mxu0 0
  %1497 = vmatprep.subr.bf16.mxu0 0
  %1498 = vmatpush2.bf16.msra.mxu0 0
  %1499 = vmatprep.subr.bf16.mxu0 0
  %1500 = vmatpush2.bf16.msra.mxu0 0
  %1501 = vmatprep.subr.bf16.mxu0 0
  %1502 = vmatpush2.bf16.msra.mxu0 0
  %1503 = vmatprep.subr.bf16.mxu0 0
  %1504 = vmatpush2.bf16.msra.mxu0 0
  %1505 = vmatprep.mubr.bf16.mxu0 0
  %1506 = vmatmul.mubr.bf16.gmra.mxu0 %v1341
  %v1507 = vpop.f32.mrf.mxu0
  %v1508 = vadd.f32 %v1467, %v1507
  %v1509 = vpop.f32.mrf.mxu0
  %v1510 = vpop.f32.mrf.mxu0
  %v1511 = vpop.f32.mrf.mxu0
  %1512 = vdwg.mxu0
  %1514 = vrot.lane.b32.xlu0 %v1508, 4
  %v1515 = vpop.permute.xlu0 %1514
  %v1517 = vsel %vm22, %v1472, %v1515
  %s1518 = scalar_lea.vmem %s4, 14
  %1519 = vst.msk [vmem:[%s1518] sm:$0x3] %vm202, %v1517
  // Predicated region
  $region18: #{spectral_conv1d.1} parent=0 // pred_check
    _
  $region19: #{spectral_conv1d.1} parent=0 // pred_check_branch
    %1521 = sbr.rel (0) target = $region21
  $region20: #{spectral_conv1d.1} parent=0 // pred_region
    _
  $region21: #{spectral_conv1d.1} parent=0 // pred_fallthru
    _
  // Predicated region
  $region22: #{spectral_conv1d.1} parent=0 // pred_check
    _
  $region23: #{spectral_conv1d.1} parent=0 // pred_check_branch
    %1523 = sbr.rel (0) target = $region25
  $region24: #{spectral_conv1d.1} parent=0 // pred_region
    _
  $region25: #{spectral_conv1d.1} parent=0 // pred_fallthru
    _

</llo_original>
